<compile_context>
chip_gen: v7x
topology: tpu7x:2x2x1
jax: 0.10.0
libtpu: 0.0.40
codegen_flags: <defaults>
</compile_context>

<pallas_src>
import jax
import jax.numpy as jnp
from jax.experimental import pallas as pl
from jax.experimental.pallas import tpu as pltpu

# Logical sizes (from the PyTorch module) and padded sizes (TPU-friendly).
IN_F, H1, H2, OUT_F = 70, 1024, 512, 8
IN_PAD, OUT_PAD = 128, 128   # pad K of layer 1 and N of layer 3 to lane width
TM_MAX = 512                 # max batch-tile rows


def _round_up(n, m):
    return (n + m - 1) // m * m


def _pad_to(a, shape):
    return jnp.pad(a, [(0, t - s) for s, t in zip(a.shape, shape)])


def _dqn_kernel(x_ref, w1_ref, b1_ref, w2_ref, b2_ref, w3_ref, b3_ref,
                o_ref, xpad_ref):
    # In-kernel pad + cast: x (TM, 70) f32 -> (TM, 128) bf16 with zero tail.
    # (Zero columns 70..127 keep the zero-padded rows of w1 inert.)
    xpad_ref[...] = jnp.zeros_like(xpad_ref)
    xpad_ref[:, :IN_F] = x_ref[...].astype(jnp.bfloat16)

    # Layer 1: (TM,128)bf16 @ (128,1024)bf16 -> f32 acc, +bias, relu, -> bf16
    h1 = jnp.dot(xpad_ref[...], w1_ref[...], preferred_element_type=jnp.float32)
    h1 = jnp.maximum(h1 + b1_ref[...], 0.0).astype(jnp.bfloat16)
    # Layer 2: (TM,1024)bf16 @ (1024,512)bf16
    h2 = jnp.dot(h1, w2_ref[...], preferred_element_type=jnp.float32)
    h2 = jnp.maximum(h2 + b2_ref[...], 0.0).astype(jnp.bfloat16)
    # Layer 3: (TM,512)bf16 @ (512,128)bf16 (cols >= 8 are zero padding)
    h3 = jnp.dot(h2, w3_ref[...], preferred_element_type=jnp.float32)
    o_ref[...] = jnp.maximum(h3 + b3_ref[...], 0.0).astype(o_ref.dtype)


def _pick_tile(B):
    """Batch tile size: big tiles for big B, >=2 grid steps for mid-size B."""
    if B <= 16:
        return _round_up(max(B, 1), 8)          # tiny batch: one small tile
    # Split into at least two grid steps (feeds both v7x TensorCores), capped
    # at TM_MAX so large batches get 512-row tiles (near-roofline per guide).
    return min(TM_MAX, _round_up((B + 1) // 2, 8))


def dqn_forward(x, packed):
    """x: (B, 70) float32.  packed: dict from pack_params (bf16 weights)."""
    B = x.shape[0]
    w1, b1 = packed["w1"], packed["b1"]
    w2, b2 = packed["w2"], packed["b2"]
    w3, b3 = packed["w3"], packed["b3"]

    TM = _pick_tile(B)
    B_pad = _round_up(B, TM)
    nb = B_pad // TM

    # Only the batch axis is padded in the wrapper (no-op when B % TM == 0);
    # the feature pad + bf16 cast happen inside the kernel.
    x_p = x if B_pad == B else jnp.pad(x, ((0, B_pad - B), (0, 0)))

    flops = 2 * B_pad * (IN_PAD * H1 + H1 * H2 + H2 * OUT_PAD)
    bytes_accessed = (
        x_p.size * 4                                   # f32 input
        + (w1.size + w2.size + w3.size) * 2            # bf16 weights
        + (b1.size + b2.size + b3.size) * 4            # f32 biases
        + B_pad * OUT_PAD * 2                          # bf16 output
    )

    out = pl.pallas_call(
        _dqn_kernel,
        out_shape=jax.ShapeDtypeStruct((B_pad, OUT_PAD), jnp.bfloat16),
        grid_spec=pltpu.PrefetchScalarGridSpec(
            num_scalar_prefetch=0,
            grid=(nb,),
            in_specs=[
                # x: (TM, 70) f32, tiled over batch, pipelined.
                # (last dim == full array dim, so (8,128) rule is satisfied)
                pl.BlockSpec((TM, IN_F), lambda i: (i, 0)),
                # Weights / biases: same block every step -> VMEM-resident.
                pl.BlockSpec((IN_PAD, H1), lambda i: (0, 0)),
                pl.BlockSpec((1, H1), lambda i: (0, 0)),
                pl.BlockSpec((H1, H2), lambda i: (0, 0)),
                pl.BlockSpec((1, H2), lambda i: (0, 0)),
                pl.BlockSpec((H2, OUT_PAD), lambda i: (0, 0)),
                pl.BlockSpec((1, OUT_PAD), lambda i: (0, 0)),
            ],
            out_specs=pl.BlockSpec((TM, OUT_PAD), lambda i: (i, 0)),
            scratch_shapes=[pltpu.VMEM((TM, IN_PAD), jnp.bfloat16)],
        ),
        compiler_params=pltpu.CompilerParams(
            dimension_semantics=("parallel",),
            vmem_limit_bytes=32 << 20,
        ),
        cost_estimate=pl.CostEstimate(
            flops=flops, transcendentals=0, bytes_accessed=bytes_accessed
        ),
    )(x_p, w1, b1, w2, b2, w3, b3)

    # Strip batch padding + padded output lanes; return f32 Q-values.
    return out[:B, :OUT_F].astype(jnp.float32)


def init_params(key):
    """Deterministic synthetic parameters with nn.Linear-like uniform init."""

    def linear(key, fan_in, fan_out):
        kw, kb = jax.random.split(key)
        bound = 1.0 / (fan_in ** 0.5)
        w = jax.random.uniform(kw, (fan_in, fan_out), jnp.float32, -bound, bound)
        b = jax.random.uniform(kb, (1, fan_out), jnp.float32, -bound, bound)
        return w, b

    k1, k2, k3 = jax.random.split(key, 3)
    w1, b1 = linear(k1, IN_F, H1)
    w2, b2 = linear(k2, H1, H2)
    w3, b3 = linear(k3, H2, OUT_F)
    return {"w1": w1, "b1": b1, "w2": w2, "b2": b2, "w3": w3, "b3": b3}


def pack_params(p):
    """One-time offline prep: pad to TPU-aligned shapes, weights -> bf16."""
    return {
        "w1": _pad_to(p["w1"], (IN_PAD, H1)).astype(jnp.bfloat16),
        "b1": p["b1"].astype(jnp.float32),
        "w2": p["w2"].astype(jnp.bfloat16),
        "b2": p["b2"].astype(jnp.float32),
        "w3": _pad_to(p["w3"], (H2, OUT_PAD)).astype(jnp.bfloat16),
        "b3": _pad_to(p["b3"], (1, OUT_PAD)).astype(jnp.float32),
    }


def _reference(x, packed):
    """Pure-JAX reference mirroring the kernel's dtype flow (bf16 edges)."""
    xb = _pad_to(x.astype(jnp.bfloat16).astype(jnp.float32),
                 (x.shape[0], IN_PAD))
    h = jnp.maximum(xb @ packed["w1"].astype(jnp.float32) + packed["b1"], 0.0)
    h = h.astype(jnp.bfloat16).astype(jnp.float32)
    h = jnp.maximum(h @ packed["w2"].astype(jnp.float32) + packed["b2"], 0.0)
    h = h.astype(jnp.bfloat16).astype(jnp.float32)
    h = jnp.maximum(h @ packed["w3"].astype(jnp.float32) + packed["b3"], 0.0)
    h = h.astype(jnp.bfloat16).astype(jnp.float32)
    return h[:, :OUT_F]


if __name__ == "__main__":
    key = jax.random.PRNGKey(0)
    kx, kx2, kp = jax.random.split(key, 3)

    raw_params = init_params(kp)
    packed = pack_params(raw_params)

    # Small inference-style batch (single grid step).
    B = 2
    x = jax.random.normal(kx, (B, IN_F), dtype=jnp.float32)
    out = jax.block_until_ready(dqn_forward(x, packed))
    ref = _reference(x, packed)
    assert out.shape == (B, OUT_F), out.shape
    assert jnp.allclose(out, ref, atol=5e-3, rtol=5e-3), "mismatch (B=2)"

    # Mid-size batch: exercises the multi-step grid + batch-padding path.
    B2 = 48
    x2 = jax.random.normal(kx2, (B2, IN_F), dtype=jnp.float32)
    out2 = jax.block_until_ready(dqn_forward(x2, packed))
    ref2 = _reference(x2, packed)
    assert out2.shape == (B2, OUT_F), out2.shape
    assert jnp.allclose(out2, ref2, atol=5e-3, rtol=5e-3), "mismatch (B=48)"

    print("KERNEL_OK")
</pallas_src>

<mosaic_0001>
module attributes {stable_mosaic.version = 11 : i64} {
  func.func @_dqn_kernel(%arg0: i32, %arg1: memref<8x70xf32, #tpu.memory_space<vmem>>, %arg2: memref<128x1024xbf16, #tpu.memory_space<vmem>>, %arg3: memref<1x1024xf32, #tpu.memory_space<vmem>>, %arg4: memref<1024x512xbf16, #tpu.memory_space<vmem>>, %arg5: memref<1x512xf32, #tpu.memory_space<vmem>>, %arg6: memref<512x128xbf16, #tpu.memory_space<vmem>>, %arg7: memref<1x128xf32, #tpu.memory_space<vmem>>, %arg8: memref<8x128xbf16, #tpu.memory_space<vmem>>, %arg9: memref<8x128xbf16, #tpu.memory_space<vmem>>) attributes {dimension_semantics = [#tpu.dimension_semantics<parallel>], iteration_bounds = array<i64: 1>, scalar_prefetch = 0 : i64, scratch_operands = 1 : i64, tpu.core_type = #tpu.core_type<tc>, window_params = [{transform_indices = @transform_0, window_bounds = array<i64: 8, 70>}, {pipeline_mode = #tpu.pipeline_mode<synchronous>, transform_indices = @transform_1, window_bounds = array<i64: 128, 1024>}, {pipeline_mode = #tpu.pipeline_mode<synchronous>, transform_indices = @transform_2, window_bounds = array<i64: 1, 1024>}, {pipeline_mode = #tpu.pipeline_mode<synchronous>, transform_indices = @transform_3, window_bounds = array<i64: 1024, 512>}, {pipeline_mode = #tpu.pipeline_mode<synchronous>, transform_indices = @transform_4, window_bounds = array<i64: 1, 512>}, {pipeline_mode = #tpu.pipeline_mode<synchronous>, transform_indices = @transform_5, window_bounds = array<i64: 512, 128>}, {pipeline_mode = #tpu.pipeline_mode<synchronous>, transform_indices = @transform_6, window_bounds = array<i64: 1, 128>}, {transform_indices = @transform_7, window_bounds = array<i64: 8, 128>}]} {
    %cst = arith.constant 0.000000e+00 : bf16
    %0 = vector.broadcast %cst : bf16 to vector<8x128xbf16>
    %c0 = arith.constant 0 : index
    %c0_0 = arith.constant 0 : index
    %1 = vector.load %arg9[%c0, %c0_0] : memref<8x128xbf16, #tpu.memory_space<vmem>>, vector<8x128xbf16>
    tpu.vector_store %arg9[%c0, %c0_0], %0 {strides = array<i32>} : memref<8x128xbf16, #tpu.memory_space<vmem>>, vector<8x128xbf16>,
    %c0_1 = arith.constant 0 : index
    %c0_2 = arith.constant 0 : index
    %2 = vector.load %arg1[%c0_1, %c0_2] : memref<8x70xf32, #tpu.memory_space<vmem>>, vector<8x70xf32>
    %3 = arith.truncf %2 : vector<8x70xf32> to vector<8x70xbf16>
    %c0_3 = arith.constant 0 : index
    %c0_4 = arith.constant 0 : index
    %4 = vector.load %arg9[%c0_3, %c0_4] : memref<8x128xbf16, #tpu.memory_space<vmem>>, vector<8x70xbf16>
    tpu.vector_store %arg9[%c0_3, %c0_4], %3 {strides = array<i32>} : memref<8x128xbf16, #tpu.memory_space<vmem>>, vector<8x70xbf16>,
    %c0_5 = arith.constant 0 : index
    %c0_6 = arith.constant 0 : index
    %5 = vector.load %arg9[%c0_5, %c0_6] : memref<8x128xbf16, #tpu.memory_space<vmem>>, vector<8x128xbf16>
    %c0_7 = arith.constant 0 : index
    %c0_8 = arith.constant 0 : index
    %6 = vector.load %arg2[%c0_7, %c0_8] : memref<128x1024xbf16, #tpu.memory_space<vmem>>, vector<128x1024xbf16>
    %cst_9 = arith.constant dense<0.000000e+00> : vector<8x1024xf32>
    %7 = tpu.matmul %5, %6, %cst_9 {dimension_numbers = #tpu.dot_dimension_numbers<[1], [0], [0], [1], [0, 0, 1, 1], [], []>} : vector<8x128xbf16>, vector<128x1024xbf16>, vector<8x1024xf32> -> vector<8x1024xf32>
    %c0_10 = arith.constant 0 : index
    %c0_11 = arith.constant 0 : index
    %8 = vector.load %arg3[%c0_10, %c0_11] : memref<1x1024xf32, #tpu.memory_space<vmem>>, vector<1x1024xf32>
    %9 = vector.broadcast %8 : vector<1x1024xf32> to vector<8x1024xf32>
    %10 = arith.addf %7, %9 : vector<8x1024xf32>
    %cst_12 = arith.constant 0.000000e+00 : f32
    %11 = vector.broadcast %cst_12 : f32 to vector<8x1024xf32>
    %12 = arith.maximumf %10, %11 : vector<8x1024xf32>
    %13 = arith.truncf %12 : vector<8x1024xf32> to vector<8x1024xbf16>
    %c0_13 = arith.constant 0 : index
    %c0_14 = arith.constant 0 : index
    %14 = vector.load %arg4[%c0_13, %c0_14] : memref<1024x512xbf16, #tpu.memory_space<vmem>>, vector<1024x512xbf16>
    %cst_15 = arith.constant dense<0.000000e+00> : vector<8x512xf32>
    %15 = tpu.matmul %13, %14, %cst_15 {dimension_numbers = #tpu.dot_dimension_numbers<[1], [0], [0], [1], [0, 0, 1, 1], [], []>} : vector<8x1024xbf16>, vector<1024x512xbf16>, vector<8x512xf32> -> vector<8x512xf32>
    %c0_16 = arith.constant 0 : index
    %c0_17 = arith.constant 0 : index
    %16 = vector.load %arg5[%c0_16, %c0_17] : memref<1x512xf32, #tpu.memory_space<vmem>>, vector<1x512xf32>
    %17 = vector.broadcast %16 : vector<1x512xf32> to vector<8x512xf32>
    %18 = arith.addf %15, %17 : vector<8x512xf32>
    %cst_18 = arith.constant 0.000000e+00 : f32
    %19 = vector.broadcast %cst_18 : f32 to vector<8x512xf32>
    %20 = arith.maximumf %18, %19 : vector<8x512xf32>
    %21 = arith.truncf %20 : vector<8x512xf32> to vector<8x512xbf16>
    %c0_19 = arith.constant 0 : index
    %c0_20 = arith.constant 0 : index
    %22 = vector.load %arg6[%c0_19, %c0_20] : memref<512x128xbf16, #tpu.memory_space<vmem>>, vector<512x128xbf16>
    %cst_21 = arith.constant dense<0.000000e+00> : vector<8x128xf32>
    %23 = tpu.matmul %21, %22, %cst_21 {dimension_numbers = #tpu.dot_dimension_numbers<[1], [0], [0], [1], [0, 0, 1, 1], [], []>} : vector<8x512xbf16>, vector<512x128xbf16>, vector<8x128xf32> -> vector<8x128xf32>
    %c0_22 = arith.constant 0 : index
    %c0_23 = arith.constant 0 : index
    %24 = vector.load %arg7[%c0_22, %c0_23] : memref<1x128xf32, #tpu.memory_space<vmem>>, vector<1x128xf32>
    %25 = vector.broadcast %24 : vector<1x128xf32> to vector<8x128xf32>
    %26 = arith.addf %23, %25 : vector<8x128xf32>
    %cst_24 = arith.constant 0.000000e+00 : f32
    %27 = vector.broadcast %cst_24 : f32 to vector<8x128xf32>
    %28 = arith.maximumf %26, %27 : vector<8x128xf32>
    %29 = arith.truncf %28 : vector<8x128xf32> to vector<8x128xbf16>
    %c0_25 = arith.constant 0 : index
    %c0_26 = arith.constant 0 : index
    %30 = vector.load %arg8[%c0_25, %c0_26] : memref<8x128xbf16, #tpu.memory_space<vmem>>, vector<8x128xbf16>
    tpu.vector_store %arg8[%c0_25, %c0_26], %29 {strides = array<i32>} : memref<8x128xbf16, #tpu.memory_space<vmem>>, vector<8x128xbf16>,
    return
  }
  func.func @transform_0(%arg0: i32) -> (i32, i32) {
    %c0_i32 = arith.constant 0 : i32
    %c0_i32_0 = arith.constant 0 : i32
    return %arg0, %c0_i32 : i32, i32
  }
  func.func @transform_1(%arg0: i32) -> (i32, i32) {
    %c0_i32 = arith.constant 0 : i32
    %c0_i32_0 = arith.constant 0 : i32
    %c0_i32_1 = arith.constant 0 : i32
    return %c0_i32, %c0_i32_0 : i32, i32
  }
  func.func @transform_2(%arg0: i32) -> (i32, i32) {
    %c0_i32 = arith.constant 0 : i32
    %c0_i32_0 = arith.constant 0 : i32
    %c0_i32_1 = arith.constant 0 : i32
    return %c0_i32, %c0_i32_0 : i32, i32
  }
  func.func @transform_3(%arg0: i32) -> (i32, i32) {
    %c0_i32 = arith.constant 0 : i32
    %c0_i32_0 = arith.constant 0 : i32
    %c0_i32_1 = arith.constant 0 : i32
    return %c0_i32, %c0_i32_0 : i32, i32
  }
  func.func @transform_4(%arg0: i32) -> (i32, i32) {
    %c0_i32 = arith.constant 0 : i32
    %c0_i32_0 = arith.constant 0 : i32
    %c0_i32_1 = arith.constant 0 : i32
    return %c0_i32, %c0_i32_0 : i32, i32
  }
  func.func @transform_5(%arg0: i32) -> (i32, i32) {
    %c0_i32 = arith.constant 0 : i32
    %c0_i32_0 = arith.constant 0 : i32
    %c0_i32_1 = arith.constant 0 : i32
    return %c0_i32, %c0_i32_0 : i32, i32
  }
  func.func @transform_6(%arg0: i32) -> (i32, i32) {
    %c0_i32 = arith.constant 0 : i32
    %c0_i32_0 = arith.constant 0 : i32
    %c0_i32_1 = arith.constant 0 : i32
    return %c0_i32, %c0_i32_0 : i32, i32
  }
  func.func @transform_7(%arg0: i32) -> (i32, i32) {
    %c0_i32 = arith.constant 0 : i32
    %c0_i32_0 = arith.constant 0 : i32
    return %arg0, %c0_i32 : i32, i32
  }
}

</mosaic_0001>

<llo_original>
// kernel: tpu_custom_call.1
$region0: #{tpu_custom_call.1}
  #allocation0 [shape = 'u32[]', space=smem, size = 0x4, offset = 0x4, fixed_abs, tag = 'smem constant byte address 0x4 - core index']
  #allocation1 [shape = 'u32[144,128]{1,0:T(1,128)}', space=vmem, size = 0x12000, scoped, tag = 'internal scratch']
  #allocation2 [shape = 'bf16[8,128]{1,0:T(8,128)(2,1)}', space=vmem, size = 0x800, scoped, tag = 'scratch operand']
  %s0 = inlined_call_operand.hbm [shape: f32[8,70], index: 0, kind: input, shape index: {}]
  %s1 = inlined_call_operand.hbm [shape: bf16[128,1024], index: 1, kind: input, shape index: {}]
  %s2 = inlined_call_operand.hbm [shape: f32[1,1024], index: 2, kind: input, shape index: {}]
  %s3 = inlined_call_operand.hbm [shape: bf16[1024,512], index: 3, kind: input, shape index: {}]
  %s4 = inlined_call_operand.vmem [shape: f32[1,512], index: 4, kind: input, shape index: {}]
  %s5 = inlined_call_operand.hbm [shape: bf16[512,128], index: 5, kind: input, shape index: {}]
  %s6 = inlined_call_operand.vmem [shape: f32[1,128], index: 6, kind: input, shape index: {}]
  %s7 = inlined_call_operand.hbm [shape: bf16[8,128], index: 7, kind: output, shape index: {}]
  %s8 = sld [smem:[#allocation0]]
  $region58: #{tpu_custom_call.1} parent=0
    _
  %s10 = ssub.s32 1, %s8
  %s11 = scalar_select 0, %s10, %s8
  $region1: #{tpu_custom_call.1} parent=0
    #allocation3 [shape = 'u8[4096]{0}', space=vmem, size = 0x1000, scoped, tag = 'input window, operand 0, single buffered']
    #allocation4 [shape = 's32[1]{0}', space=sflag, size = 0x4, scoped, tag = 'scoped memory for tpu_custom_call.1']
    #allocation5 [shape = 's32[1]{0}', space=sflag, size = 0x4, scoped, tag = 'scoped memory for tpu_custom_call.1']
    #allocation6 [shape = 'u8[262144]{0}', space=vmem, size = 0x40000, scoped, tag = 'input window, operand 1, single buffered']
    #allocation7 [shape = 's32[1]{0}', space=sflag, size = 0x4, scoped, tag = 'scoped memory for tpu_custom_call.1']
    #allocation8 [shape = 'u8[4096]{0}', space=vmem, size = 0x1000, scoped, tag = 'input window, operand 2, single buffered']
    #allocation9 [shape = 'u8[1048576]{0}', space=vmem, size = 0x100000, scoped, tag = 'input window, operand 3, single buffered']
    #allocation10 [shape = 's32[1]{0}', space=sflag, size = 0x4, scoped, tag = 'scoped memory for tpu_custom_call.1']
    #allocation11 [shape = 'u8[131072]{0}', space=vmem, size = 0x20000, scoped, tag = 'input window, operand 5, single buffered']
    #allocation12 [shape = 'u8[2048]{0}', space=vmem, size = 0x800, scoped, tag = 'output window, operand 0, single buffered']
    %12 = vsyncpa [#allocation4], 0
    %13 = vsyncpa [#allocation7], 0
    %14 = vsyncpa [#allocation10], 0
    %15 = vsyncpa [#allocation5], 0
    // Predicated region
    $region2: #{tpu_custom_call.1} parent=1 // pred_check
      _
    $region3: #{tpu_custom_call.1} parent=1 // pred_check_branch
      %17 = sbr.rel (0) target = $region5
    $region4: #{tpu_custom_call.1} parent=1 // pred_region
      %s19 = ssub.s32 128, 128
      %20 = vsyncadd [#allocation4], %s19
      %s22 = sshll.u32 [#allocation3], 4
      %s23 = int_to_ptr.vmem [resolvable:$true] %s22
      %25 = dma.hbm_to_vmem [thread:$0]  %s0, 128, %s23, [#allocation4]
    $region5: #{tpu_custom_call.1} parent=1 // pred_fallthru
      _
    // Predicated region
    $region6: #{tpu_custom_call.1} parent=1 // pred_check
      _
    $region7: #{tpu_custom_call.1} parent=1 // pred_check_branch
      %27 = sbr.rel (0) target = $region9
    $region8: #{tpu_custom_call.1} parent=1 // pred_region
      %s29 = ssub.s32 8192, 8192
      %30 = vsyncadd [#allocation7], %s29
      %s31 = sshll.u32 [#allocation6], 4
      %s32 = int_to_ptr.vmem [resolvable:$true] %s31
      %37 = dma.hbm_to_vmem [thread:$0]  %s1, 8192, %s32, [#allocation7], 512, 512, 32
    $region9: #{tpu_custom_call.1} parent=1 // pred_fallthru
      _
    // Predicated region
    $region10: #{tpu_custom_call.1} parent=1 // pred_check
      _
    $region11: #{tpu_custom_call.1} parent=1 // pred_check_branch
      %39 = sbr.rel (0) target = $region13
    $region12: #{tpu_custom_call.1} parent=1 // pred_region
      %s41 = ssub.s32 128, 128
      %42 = vsyncadd [#allocation7], %s41
      %s44 = sshll.u32 [#allocation8], 4
      %s45 = int_to_ptr.vmem [resolvable:$true] %s44
      %47 = dma.hbm_to_vmem [thread:$0]  %s2, 128, %s45, [#allocation7]
    $region13: #{tpu_custom_call.1} parent=1 // pred_fallthru
      _
    // Predicated region
    $region14: #{tpu_custom_call.1} parent=1 // pred_check
      _
    $region15: #{tpu_custom_call.1} parent=1 // pred_check_branch
      %49 = sbr.rel (0) target = $region17
    $region16: #{tpu_custom_call.1} parent=1 // pred_region
      %s51 = ssub.s32 32768, 32768
      %52 = vsyncadd [#allocation10], %s51
      %s53 = sshll.u32 [#allocation9], 4
      %s54 = int_to_ptr.vmem [resolvable:$true] %s53
      %59 = dma.hbm_to_vmem [thread:$0]  %s3, 32768, %s54, [#allocation10], 256, 256, 16
    $region17: #{tpu_custom_call.1} parent=1 // pred_fallthru
      _
    // Predicated region
    $region18: #{tpu_custom_call.1} parent=1 // pred_check
      _
    $region19: #{tpu_custom_call.1} parent=1 // pred_check_branch
      %61 = sbr.rel (0) target = $region21
    $region20: #{tpu_custom_call.1} parent=1 // pred_region
      _
    $region21: #{tpu_custom_call.1} parent=1 // pred_fallthru
      _
    // Predicated region
    $region22: #{tpu_custom_call.1} parent=1 // pred_check
      _
    $region23: #{tpu_custom_call.1} parent=1 // pred_check_branch
      %63 = sbr.rel (0) target = $region25
    $region24: #{tpu_custom_call.1} parent=1 // pred_region
      %s65 = ssub.s32 4096, 4096
      %66 = vsyncadd [#allocation10], %s65
      %s67 = sshll.u32 [#allocation11], 4
      %s68 = int_to_ptr.vmem [resolvable:$true] %s67
      %73 = dma.hbm_to_vmem [thread:$0]  %s5, 4096, %s68, [#allocation10], 64, 64, 4
    $region25: #{tpu_custom_call.1} parent=1 // pred_fallthru
      _
    // Predicated region
    $region26: #{tpu_custom_call.1} parent=1 // pred_check
      _
    $region27: #{tpu_custom_call.1} parent=1 // pred_check_branch
      %75 = sbr.rel (0) target = $region29
    $region28: #{tpu_custom_call.1} parent=1 // pred_region
      _
    $region29: #{tpu_custom_call.1} parent=1 // pred_fallthru
      _
    // Predicated region
    $region30: #{tpu_custom_call.1} parent=1 // pred_check
      _
    $region31: #{tpu_custom_call.1} parent=1 // pred_check_branch
      %77 = sbr.rel (0) target = $region33
    $region32: #{tpu_custom_call.1} parent=1 // pred_region
      %78 = dma.done [#allocation4], 128
    $region33: #{tpu_custom_call.1} parent=1 // pred_fallthru
      _
    // Predicated region
    $region34: #{tpu_custom_call.1} parent=1 // pred_check
      _
    $region35: #{tpu_custom_call.1} parent=1 // pred_check_branch
      %80 = sbr.rel (0) target = $region37
    $region36: #{tpu_custom_call.1} parent=1 // pred_region
      %81 = dma.done [#allocation7], 8192
    $region37: #{tpu_custom_call.1} parent=1 // pred_fallthru
      _
    // Predicated region
    $region38: #{tpu_custom_call.1} parent=1 // pred_check
      _
    $region39: #{tpu_custom_call.1} parent=1 // pred_check_branch
      %83 = sbr.rel (0) target = $region41
    $region40: #{tpu_custom_call.1} parent=1 // pred_region
      %84 = dma.done [#allocation7], 128
    $region41: #{tpu_custom_call.1} parent=1 // pred_fallthru
      _
    // Predicated region
    $region42: #{tpu_custom_call.1} parent=1 // pred_check
      _
    $region43: #{tpu_custom_call.1} parent=1 // pred_check_branch
      %86 = sbr.rel (0) target = $region45
    $region44: #{tpu_custom_call.1} parent=1 // pred_region
      %87 = dma.done [#allocation10], 32768
    $region45: #{tpu_custom_call.1} parent=1 // pred_fallthru
      _
    // Predicated region
    $region46: #{tpu_custom_call.1} parent=1 // pred_check
      _
    $region47: #{tpu_custom_call.1} parent=1 // pred_check_branch
      %89 = sbr.rel (0) target = $region49
    $region48: #{tpu_custom_call.1} parent=1 // pred_region
      %90 = dma.done [#allocation10], 4096
    $region49: #{tpu_custom_call.1} parent=1 // pred_fallthru
      _
    %92 = vst [vmem:[#allocation2] sm:$0xf] 0
    %v93 = vld [vmem:[#allocation3] sm:$0xff]
    %v94 = vpack.c.bf16 %v93, %v93
    %vm95 = vcmask 568320
    %96 = vst.msk [vmem:[#allocation2] sm:$0xf] %vm95, %v94
    %v97 = vld [vmem:[#allocation2] sm:$0xf]
    %v98 = vld [vmem:[#allocation6] sm:$0xff]
    %v99 = vld [vmem:[#allocation6 + $0x8] sm:$0xff]
    %v100 = vld [vmem:[#allocation6 + $0x10] sm:$0xff]
    %v101 = vld [vmem:[#allocation6 + $0x18] sm:$0xff]
    %v102 = vld [vmem:[#allocation6 + $0x20] sm:$0xff]
    %v103 = vld [vmem:[#allocation6 + $0x28] sm:$0xff]
    %v104 = vld [vmem:[#allocation6 + $0x30] sm:$0xff]
    %v105 = vld [vmem:[#allocation6 + $0x38] sm:$0xff]
    %v106 = vld [vmem:[#allocation6 + $0x40] sm:$0xff]
    %v107 = vld [vmem:[#allocation6 + $0x48] sm:$0xff]
    %v108 = vld [vmem:[#allocation6 + $0x50] sm:$0xff]
    %v109 = vld [vmem:[#allocation6 + $0x58] sm:$0xff]
    %v110 = vld [vmem:[#allocation6 + $0x60] sm:$0xff]
    %v111 = vld [vmem:[#allocation6 + $0x68] sm:$0xff]
    %v112 = vld [vmem:[#allocation6 + $0x70] sm:$0xff]
    %v113 = vld [vmem:[#allocation6 + $0x78] sm:$0xff]
    %v114 = vld [vmem:[#allocation6 + $0x80] sm:$0xff]
    %v115 = vld [vmem:[#allocation6 + $0x88] sm:$0xff]
    %v116 = vld [vmem:[#allocation6 + $0x90] sm:$0xff]
    %v117 = vld [vmem:[#allocation6 + $0x98] sm:$0xff]
    %v118 = vld [vmem:[#allocation6 + $0xa0] sm:$0xff]
    %v119 = vld [vmem:[#allocation6 + $0xa8] sm:$0xff]
    %v120 = vld [vmem:[#allocation6 + $0xb0] sm:$0xff]
    %v121 = vld [vmem:[#allocation6 + $0xb8] sm:$0xff]
    %v122 = vld [vmem:[#allocation6 + $0xc0] sm:$0xff]
    %v123 = vld [vmem:[#allocation6 + $0xc8] sm:$0xff]
    %v124 = vld [vmem:[#allocation6 + $0xd0] sm:$0xff]
    %v125 = vld [vmem:[#allocation6 + $0xd8] sm:$0xff]
    %v126 = vld [vmem:[#allocation6 + $0xe0] sm:$0xff]
    %v127 = vld [vmem:[#allocation6 + $0xe8] sm:$0xff]
    %v128 = vld [vmem:[#allocation6 + $0xf0] sm:$0xff]
    %v129 = vld [vmem:[#allocation6 + $0xf8] sm:$0xff]
    %v130 = vld [vmem:[#allocation6 + $0x100] sm:$0xff]
    %v131 = vld [vmem:[#allocation6 + $0x108] sm:$0xff]
    %v132 = vld [vmem:[#allocation6 + $0x110] sm:$0xff]
    %v133 = vld [vmem:[#allocation6 + $0x118] sm:$0xff]
    %v134 = vld [vmem:[#allocation6 + $0x120] sm:$0xff]
    %v135 = vld [vmem:[#allocation6 + $0x128] sm:$0xff]
    %v136 = vld [vmem:[#allocation6 + $0x130] sm:$0xff]
    %v137 = vld [vmem:[#allocation6 + $0x138] sm:$0xff]
    %v138 = vld [vmem:[#allocation6 + $0x140] sm:$0xff]
    %v139 = vld [vmem:[#allocation6 + $0x148] sm:$0xff]
    %v140 = vld [vmem:[#allocation6 + $0x150] sm:$0xff]
    %v141 = vld [vmem:[#allocation6 + $0x158] sm:$0xff]
    %v142 = vld [vmem:[#allocation6 + $0x160] sm:$0xff]
    %v143 = vld [vmem:[#allocation6 + $0x168] sm:$0xff]
    %v144 = vld [vmem:[#allocation6 + $0x170] sm:$0xff]
    %v145 = vld [vmem:[#allocation6 + $0x178] sm:$0xff]
    %v146 = vld [vmem:[#allocation6 + $0x180] sm:$0xff]
    %v147 = vld [vmem:[#allocation6 + $0x188] sm:$0xff]
    %v148 = vld [vmem:[#allocation6 + $0x190] sm:$0xff]
    %v149 = vld [vmem:[#allocation6 + $0x198] sm:$0xff]
    %v150 = vld [vmem:[#allocation6 + $0x1a0] sm:$0xff]
    %v151 = vld [vmem:[#allocation6 + $0x1a8] sm:$0xff]
    %v152 = vld [vmem:[#allocation6 + $0x1b0] sm:$0xff]
    %v153 = vld [vmem:[#allocation6 + $0x1b8] sm:$0xff]
    %v154 = vld [vmem:[#allocation6 + $0x1c0] sm:$0xff]
    %v155 = vld [vmem:[#allocation6 + $0x1c8] sm:$0xff]
    %v156 = vld [vmem:[#allocation6 + $0x1d0] sm:$0xff]
    %v157 = vld [vmem:[#allocation6 + $0x1d8] sm:$0xff]
    %v158 = vld [vmem:[#allocation6 + $0x1e0] sm:$0xff]
    %v159 = vld [vmem:[#allocation6 + $0x1e8] sm:$0xff]
    %v160 = vld [vmem:[#allocation6 + $0x1f0] sm:$0xff]
    %v161 = vld [vmem:[#allocation6 + $0x1f8] sm:$0xff]
    %v162 = vld [vmem:[#allocation8] sm:$0xff]
    %v164 = vlaneseq
    %v165 = vshrl.u32 %v164, 7
    %v166 = vsub.s32 0, %v165
    %v167 = vrot.slane %v162, %v166
    %v168 = vlaneseq
    %v169 = vshrl.u32 %v168, 7
    %v170 = vsub.s32 1, %v169
    %v171 = vrot.slane %v162, %v170
    %v172 = vlaneseq
    %v173 = vshrl.u32 %v172, 7
    %v174 = vsub.s32 2, %v173
    %v175 = vrot.slane %v162, %v174
    %v176 = vlaneseq
    %v177 = vshrl.u32 %v176, 7
    %v178 = vsub.s32 3, %v177
    %v179 = vrot.slane %v162, %v178
    %v180 = vlaneseq
    %v181 = vshrl.u32 %v180, 7
    %v182 = vsub.s32 4, %v181
    %v183 = vrot.slane %v162, %v182
    %v184 = vlaneseq
    %v185 = vshrl.u32 %v184, 7
    %v186 = vsub.s32 5, %v185
    %v187 = vrot.slane %v162, %v186
    %v188 = vlaneseq
    %v189 = vshrl.u32 %v188, 7
    %v190 = vsub.s32 6, %v189
    %v191 = vrot.slane %v162, %v190
    %v192 = vlaneseq
    %v193 = vshrl.u32 %v192, 7
    %v194 = vsub.s32 7, %v193
    %v195 = vrot.slane %v162, %v194
    %v268 = vunpack.c.l.b16 %v98
    %v269 = vunpack.c.h.b16 %v98
    %v270 = vunpack.c.l.b16 %v99
    %v271 = vunpack.c.h.b16 %v99
    %v272 = vunpack.c.l.b16 %v100
    %v273 = vunpack.c.h.b16 %v100
    %v274 = vunpack.c.l.b16 %v101
    %v275 = vunpack.c.h.b16 %v101
    %v276 = vunpack.c.l.b16 %v102
    %v277 = vunpack.c.h.b16 %v102
    %v278 = vunpack.c.l.b16 %v103
    %v279 = vunpack.c.h.b16 %v103
    %v280 = vunpack.c.l.b16 %v104
    %v281 = vunpack.c.h.b16 %v104
    %v282 = vunpack.c.l.b16 %v105
    %v283 = vunpack.c.h.b16 %v105
    %v284 = vunpack.c.l.b16 %v106
    %v285 = vunpack.c.h.b16 %v106
    %v286 = vunpack.c.l.b16 %v107
    %v287 = vunpack.c.h.b16 %v107
    %v288 = vunpack.c.l.b16 %v108
    %v289 = vunpack.c.h.b16 %v108
    %v290 = vunpack.c.l.b16 %v109
    %v291 = vunpack.c.h.b16 %v109
    %v292 = vunpack.c.l.b16 %v110
    %v293 = vunpack.c.h.b16 %v110
    %v294 = vunpack.c.l.b16 %v111
    %v295 = vunpack.c.h.b16 %v111
    %v296 = vunpack.c.l.b16 %v112
    %v297 = vunpack.c.h.b16 %v112
    %v298 = vunpack.c.l.b16 %v113
    %v299 = vunpack.c.h.b16 %v113
    %v300 = vunpack.c.l.b16 %v114
    %v301 = vunpack.c.h.b16 %v114
    %v302 = vunpack.c.l.b16 %v115
    %v303 = vunpack.c.h.b16 %v115
    %v304 = vunpack.c.l.b16 %v116
    %v305 = vunpack.c.h.b16 %v116
    %v306 = vunpack.c.l.b16 %v117
    %v307 = vunpack.c.h.b16 %v117
    %v308 = vunpack.c.l.b16 %v118
    %v309 = vunpack.c.h.b16 %v118
    %v310 = vunpack.c.l.b16 %v119
    %v311 = vunpack.c.h.b16 %v119
    %v312 = vunpack.c.l.b16 %v120
    %v313 = vunpack.c.h.b16 %v120
    %v314 = vunpack.c.l.b16 %v121
    %v315 = vunpack.c.h.b16 %v121
    %v316 = vunpack.c.l.b16 %v122
    %v317 = vunpack.c.h.b16 %v122
    %v318 = vunpack.c.l.b16 %v123
    %v319 = vunpack.c.h.b16 %v123
    %v320 = vunpack.c.l.b16 %v124
    %v321 = vunpack.c.h.b16 %v124
    %v322 = vunpack.c.l.b16 %v125
    %v323 = vunpack.c.h.b16 %v125
    %v324 = vunpack.c.l.b16 %v126
    %v325 = vunpack.c.h.b16 %v126
    %v326 = vunpack.c.l.b16 %v127
    %v327 = vunpack.c.h.b16 %v127
    %v328 = vunpack.c.l.b16 %v128
    %v329 = vunpack.c.h.b16 %v128
    %v330 = vunpack.c.l.b16 %v129
    %v331 = vunpack.c.h.b16 %v129
    %v332 = vunpack.c.l.b16 %v130
    %v333 = vunpack.c.h.b16 %v130
    %v334 = vunpack.c.l.b16 %v131
    %v335 = vunpack.c.h.b16 %v131
    %v336 = vunpack.c.l.b16 %v132
    %v337 = vunpack.c.h.b16 %v132
    %v338 = vunpack.c.l.b16 %v133
    %v339 = vunpack.c.h.b16 %v133
    %v340 = vunpack.c.l.b16 %v134
    %v341 = vunpack.c.h.b16 %v134
    %v342 = vunpack.c.l.b16 %v135
    %v343 = vunpack.c.h.b16 %v135
    %v344 = vunpack.c.l.b16 %v136
    %v345 = vunpack.c.h.b16 %v136
    %v346 = vunpack.c.l.b16 %v137
    %v347 = vunpack.c.h.b16 %v137
    %v348 = vunpack.c.l.b16 %v138
    %v349 = vunpack.c.h.b16 %v138
    %v350 = vunpack.c.l.b16 %v139
    %v351 = vunpack.c.h.b16 %v139
    %v352 = vunpack.c.l.b16 %v140
    %v353 = vunpack.c.h.b16 %v140
    %v354 = vunpack.c.l.b16 %v141
    %v355 = vunpack.c.h.b16 %v141
    %v356 = vunpack.c.l.b16 %v142
    %v357 = vunpack.c.h.b16 %v142
    %v358 = vunpack.c.l.b16 %v143
    %v359 = vunpack.c.h.b16 %v143
    %v360 = vunpack.c.l.b16 %v144
    %v361 = vunpack.c.h.b16 %v144
    %v362 = vunpack.c.l.b16 %v145
    %v363 = vunpack.c.h.b16 %v145
    %v364 = vunpack.c.l.b16 %v146
    %v365 = vunpack.c.h.b16 %v146
    %v366 = vunpack.c.l.b16 %v147
    %v367 = vunpack.c.h.b16 %v147
    %v368 = vunpack.c.l.b16 %v148
    %v369 = vunpack.c.h.b16 %v148
    %v370 = vunpack.c.l.b16 %v149
    %v371 = vunpack.c.h.b16 %v149
    %v372 = vunpack.c.l.b16 %v150
    %v373 = vunpack.c.h.b16 %v150
    %v374 = vunpack.c.l.b16 %v151
    %v375 = vunpack.c.h.b16 %v151
    %v376 = vunpack.c.l.b16 %v152
    %v377 = vunpack.c.h.b16 %v152
    %v378 = vunpack.c.l.b16 %v153
    %v379 = vunpack.c.h.b16 %v153
    %v380 = vunpack.c.l.b16 %v154
    %v381 = vunpack.c.h.b16 %v154
    %v382 = vunpack.c.l.b16 %v155
    %v383 = vunpack.c.h.b16 %v155
    %v384 = vunpack.c.l.b16 %v156
    %v385 = vunpack.c.h.b16 %v156
    %v386 = vunpack.c.l.b16 %v157
    %v387 = vunpack.c.h.b16 %v157
    %v388 = vunpack.c.l.b16 %v158
    %v389 = vunpack.c.h.b16 %v158
    %v390 = vunpack.c.l.b16 %v159
    %v391 = vunpack.c.h.b16 %v159
    %v392 = vunpack.c.l.b16 %v160
    %v393 = vunpack.c.h.b16 %v160
    %v394 = vunpack.c.l.b16 %v161
    %v395 = vunpack.c.h.b16 %v161
    %v396 = vpack.c.b16 %v276, %v268
    %v397 = vpack.c.b16 %v277, %v269
    %v398 = vpack.c.b16 %v278, %v270
    %v399 = vpack.c.b16 %v279, %v271
    %v400 = vpack.c.b16 %v280, %v272
    %v401 = vpack.c.b16 %v281, %v273
    %v402 = vpack.c.b16 %v282, %v274
    %v403 = vpack.c.b16 %v283, %v275
    %v404 = vpack.c.b16 %v292, %v284
    %v405 = vpack.c.b16 %v293, %v285
    %v406 = vpack.c.b16 %v294, %v286
    %v407 = vpack.c.b16 %v295, %v287
    %v408 = vpack.c.b16 %v296, %v288
    %v409 = vpack.c.b16 %v297, %v289
    %v410 = vpack.c.b16 %v298, %v290
    %v411 = vpack.c.b16 %v299, %v291
    %v412 = vpack.c.b16 %v308, %v300
    %v413 = vpack.c.b16 %v309, %v301
    %v414 = vpack.c.b16 %v310, %v302
    %v415 = vpack.c.b16 %v311, %v303
    %v416 = vpack.c.b16 %v312, %v304
    %v417 = vpack.c.b16 %v313, %v305
    %v418 = vpack.c.b16 %v314, %v306
    %v419 = vpack.c.b16 %v315, %v307
    %v420 = vpack.c.b16 %v324, %v316
    %v421 = vpack.c.b16 %v325, %v317
    %v422 = vpack.c.b16 %v326, %v318
    %v423 = vpack.c.b16 %v327, %v319
    %v424 = vpack.c.b16 %v328, %v320
    %v425 = vpack.c.b16 %v329, %v321
    %v426 = vpack.c.b16 %v330, %v322
    %v427 = vpack.c.b16 %v331, %v323
    %v428 = vpack.c.b16 %v340, %v332
    %v429 = vpack.c.b16 %v341, %v333
    %v430 = vpack.c.b16 %v342, %v334
    %v431 = vpack.c.b16 %v343, %v335
    %v432 = vpack.c.b16 %v344, %v336
    %v433 = vpack.c.b16 %v345, %v337
    %v434 = vpack.c.b16 %v346, %v338
    %v435 = vpack.c.b16 %v347, %v339
    %v436 = vpack.c.b16 %v356, %v348
    %v437 = vpack.c.b16 %v357, %v349
    %v438 = vpack.c.b16 %v358, %v350
    %v439 = vpack.c.b16 %v359, %v351
    %v440 = vpack.c.b16 %v360, %v352
    %v441 = vpack.c.b16 %v361, %v353
    %v442 = vpack.c.b16 %v362, %v354
    %v443 = vpack.c.b16 %v363, %v355
    %v444 = vpack.c.b16 %v372, %v364
    %v445 = vpack.c.b16 %v373, %v365
    %v446 = vpack.c.b16 %v374, %v366
    %v447 = vpack.c.b16 %v375, %v367
    %v448 = vpack.c.b16 %v376, %v368
    %v449 = vpack.c.b16 %v377, %v369
    %v450 = vpack.c.b16 %v378, %v370
    %v451 = vpack.c.b16 %v379, %v371
    %v452 = vpack.c.b16 %v388, %v380
    %v453 = vpack.c.b16 %v389, %v381
    %v454 = vpack.c.b16 %v390, %v382
    %v455 = vpack.c.b16 %v391, %v383
    %v456 = vpack.c.b16 %v392, %v384
    %v457 = vpack.c.b16 %v393, %v385
    %v458 = vpack.c.b16 %v394, %v386
    %v459 = vpack.c.b16 %v395, %v387
    %524 = vmatprep.subr.bf16.mxu0 %v397
    %525 = vmatpush1.bf16.msra.mxu0 %v396
    %526 = vmatprep.subr.bf16.mxu0 %v405
    %527 = vmatpush1.bf16.msra.mxu0 %v404
    %528 = vmatprep.subr.bf16.mxu0 %v413
    %529 = vmatpush1.bf16.msra.mxu0 %v412
    %530 = vmatprep.subr.bf16.mxu0 %v421
    %531 = vmatpush1.bf16.msra.mxu0 %v420
    %532 = vmatprep.subr.bf16.mxu0 %v429
    %533 = vmatpush1.bf16.msra.mxu0 %v428
    %534 = vmatprep.subr.bf16.mxu0 %v437
    %535 = vmatpush1.bf16.msra.mxu0 %v436
    %536 = vmatprep.subr.bf16.mxu0 %v445
    %537 = vmatpush1.bf16.msra.mxu0 %v444
    %538 = vmatprep.subr.bf16.mxu0 %v453
    %539 = vmatpush1.bf16.msra.mxu0 %v452
    %540 = vmatprep.subr.bf16.mxu0 0
    %541 = vmatpush1.bf16.msra.mxu0 0
    %542 = vmatprep.subr.bf16.mxu0 0
    %543 = vmatpush1.bf16.msra.mxu0 0
    %544 = vmatprep.subr.bf16.mxu0 0
    %545 = vmatpush1.bf16.msra.mxu0 0
    %546 = vmatprep.subr.bf16.mxu0 0
    %547 = vmatpush1.bf16.msra.mxu0 0
    %548 = vmatprep.subr.bf16.mxu0 0
    %549 = vmatpush1.bf16.msra.mxu0 0
    %550 = vmatprep.subr.bf16.mxu0 0
    %551 = vmatpush1.bf16.msra.mxu0 0
    %552 = vmatprep.subr.bf16.mxu0 0
    %553 = vmatpush1.bf16.msra.mxu0 0
    %554 = vmatprep.subr.bf16.mxu0 0
    %555 = vmatpush1.bf16.msra.mxu0 0
    %556 = vmatprep.mubr.bf16.mxu0 0
    %557 = vmatmul.mubr.bf16.gmra.mrb[0].mxu0 %v97
    %v558 = vpop.f32.mrb[0].mxu0
    %v559 = vadd.f32 %v167, %v558
    %v560 = vpop.f32.mrb[0].mxu0
    %v561 = vadd.f32 %v171, %v560
    %v562 = vpop.f32.mrb[0].mxu0
    %v563 = vpop.f32.mrb[0].mxu0
    %564 = vdwg.mxu0
    %565 = vmatprep.subr.bf16.mxu0 %v399
    %566 = vmatpush1.bf16.msra.mxu0 %v398
    %567 = vmatprep.subr.bf16.mxu0 %v407
    %568 = vmatpush1.bf16.msra.mxu0 %v406
    %569 = vmatprep.subr.bf16.mxu0 %v415
    %570 = vmatpush1.bf16.msra.mxu0 %v414
    %571 = vmatprep.subr.bf16.mxu0 %v423
    %572 = vmatpush1.bf16.msra.mxu0 %v422
    %573 = vmatprep.subr.bf16.mxu0 %v431
    %574 = vmatpush1.bf16.msra.mxu0 %v430
    %575 = vmatprep.subr.bf16.mxu0 %v439
    %576 = vmatpush1.bf16.msra.mxu0 %v438
    %577 = vmatprep.subr.bf16.mxu0 %v447
    %578 = vmatpush1.bf16.msra.mxu0 %v446
    %579 = vmatprep.subr.bf16.mxu0 %v455
    %580 = vmatpush1.bf16.msra.mxu0 %v454
    %581 = vmatprep.subr.bf16.mxu0 0
    %582 = vmatpush1.bf16.msra.mxu0 0
    %583 = vmatprep.subr.bf16.mxu0 0
    %584 = vmatpush1.bf16.msra.mxu0 0
    %585 = vmatprep.subr.bf16.mxu0 0
    %586 = vmatpush1.bf16.msra.mxu0 0
    %587 = vmatprep.subr.bf16.mxu0 0
    %588 = vmatpush1.bf16.msra.mxu0 0
    %589 = vmatprep.subr.bf16.mxu0 0
    %590 = vmatpush1.bf16.msra.mxu0 0
    %591 = vmatprep.subr.bf16.mxu0 0
    %592 = vmatpush1.bf16.msra.mxu0 0
    %593 = vmatprep.subr.bf16.mxu0 0
    %594 = vmatpush1.bf16.msra.mxu0 0
    %595 = vmatprep.subr.bf16.mxu0 0
    %596 = vmatpush1.bf16.msra.mxu0 0
    %597 = vmatprep.mubr.bf16.mxu0 0
    %598 = vmatmul.mubr.bf16.gmra.mrb[0].mxu0 %v97
    %v599 = vpop.f32.mrb[0].mxu0
    %v600 = vadd.f32 %v175, %v599
    %v601 = vpop.f32.mrb[0].mxu0
    %v602 = vadd.f32 %v179, %v601
    %v603 = vpop.f32.mrb[0].mxu0
    %v604 = vpop.f32.mrb[0].mxu0
    %605 = vdwg.mxu0
    %606 = vmatprep.subr.bf16.mxu0 %v401
    %607 = vmatpush1.bf16.msra.mxu0 %v400
    %608 = vmatprep.subr.bf16.mxu0 %v409
    %609 = vmatpush1.bf16.msra.mxu0 %v408
    %610 = vmatprep.subr.bf16.mxu0 %v417
    %611 = vmatpush1.bf16.msra.mxu0 %v416
    %612 = vmatprep.subr.bf16.mxu0 %v425
    %613 = vmatpush1.bf16.msra.mxu0 %v424
    %614 = vmatprep.subr.bf16.mxu0 %v433
    %615 = vmatpush1.bf16.msra.mxu0 %v432
    %616 = vmatprep.subr.bf16.mxu0 %v441
    %617 = vmatpush1.bf16.msra.mxu0 %v440
    %618 = vmatprep.subr.bf16.mxu0 %v449
    %619 = vmatpush1.bf16.msra.mxu0 %v448
    %620 = vmatprep.subr.bf16.mxu0 %v457
    %621 = vmatpush1.bf16.msra.mxu0 %v456
    %622 = vmatprep.subr.bf16.mxu0 0
    %623 = vmatpush1.bf16.msra.mxu0 0
    %624 = vmatprep.subr.bf16.mxu0 0
    %625 = vmatpush1.bf16.msra.mxu0 0
    %626 = vmatprep.subr.bf16.mxu0 0
    %627 = vmatpush1.bf16.msra.mxu0 0
    %628 = vmatprep.subr.bf16.mxu0 0
    %629 = vmatpush1.bf16.msra.mxu0 0
    %630 = vmatprep.subr.bf16.mxu0 0
    %631 = vmatpush1.bf16.msra.mxu0 0
    %632 = vmatprep.subr.bf16.mxu0 0
    %633 = vmatpush1.bf16.msra.mxu0 0
    %634 = vmatprep.subr.bf16.mxu0 0
    %635 = vmatpush1.bf16.msra.mxu0 0
    %636 = vmatprep.subr.bf16.mxu0 0
    %637 = vmatpush1.bf16.msra.mxu0 0
    %638 = vmatprep.mubr.bf16.mxu0 0
    %639 = vmatmul.mubr.bf16.gmra.mrb[0].mxu0 %v97
    %v640 = vpop.f32.mrb[0].mxu0
    %v641 = vadd.f32 %v183, %v640
    %v642 = vpop.f32.mrb[0].mxu0
    %v643 = vadd.f32 %v187, %v642
    %v644 = vpop.f32.mrb[0].mxu0
    %v645 = vpop.f32.mrb[0].mxu0
    %646 = vdwg.mxu0
    %647 = vmatprep.subr.bf16.mxu0 %v403
    %648 = vmatpush1.bf16.msra.mxu0 %v402
    %649 = vmatprep.subr.bf16.mxu0 %v411
    %650 = vmatpush1.bf16.msra.mxu0 %v410
    %651 = vmatprep.subr.bf16.mxu0 %v419
    %652 = vmatpush1.bf16.msra.mxu0 %v418
    %653 = vmatprep.subr.bf16.mxu0 %v427
    %654 = vmatpush1.bf16.msra.mxu0 %v426
    %655 = vmatprep.subr.bf16.mxu0 %v435
    %656 = vmatpush1.bf16.msra.mxu0 %v434
    %657 = vmatprep.subr.bf16.mxu0 %v443
    %658 = vmatpush1.bf16.msra.mxu0 %v442
    %659 = vmatprep.subr.bf16.mxu0 %v451
    %660 = vmatpush1.bf16.msra.mxu0 %v450
    %661 = vmatprep.subr.bf16.mxu0 %v459
    %662 = vmatpush1.bf16.msra.mxu0 %v458
    %663 = vmatprep.subr.bf16.mxu0 0
    %664 = vmatpush1.bf16.msra.mxu0 0
    %665 = vmatprep.subr.bf16.mxu0 0
    %666 = vmatpush1.bf16.msra.mxu0 0
    %667 = vmatprep.subr.bf16.mxu0 0
    %668 = vmatpush1.bf16.msra.mxu0 0
    %669 = vmatprep.subr.bf16.mxu0 0
    %670 = vmatpush1.bf16.msra.mxu0 0
    %671 = vmatprep.subr.bf16.mxu0 0
    %672 = vmatpush1.bf16.msra.mxu0 0
    %673 = vmatprep.subr.bf16.mxu0 0
    %674 = vmatpush1.bf16.msra.mxu0 0
    %675 = vmatprep.subr.bf16.mxu0 0
    %676 = vmatpush1.bf16.msra.mxu0 0
    %677 = vmatprep.subr.bf16.mxu0 0
    %678 = vmatpush1.bf16.msra.mxu0 0
    %679 = vmatprep.mubr.bf16.mxu0 0
    %680 = vmatmul.mubr.bf16.gmra.mrb[0].mxu0 %v97
    %v681 = vpop.f32.mrb[0].mxu0
    %v682 = vadd.f32 %v191, %v681
    %v683 = vpop.f32.mrb[0].mxu0
    %v684 = vadd.f32 %v195, %v683
    %v685 = vpop.f32.mrb[0].mxu0
    %v686 = vpop.f32.mrb[0].mxu0
    %687 = vdwg.mxu0
    %v688 = vmax.f32 %v559, 0.0
    %v689 = vmax.f32 %v561, 0.0
    %v690 = vmax.f32 %v600, 0.0
    %v691 = vmax.f32 %v602, 0.0
    %v692 = vmax.f32 %v641, 0.0
    %v693 = vmax.f32 %v643, 0.0
    %v694 = vmax.f32 %v682, 0.0
    %v695 = vmax.f32 %v684, 0.0
    %v696 = vpack.c.bf16 %v688, %v688
    %v697 = vpack.c.bf16 %v689, %v689
    %v698 = vpack.c.bf16 %v690, %v690
    %v699 = vpack.c.bf16 %v691, %v691
    %v700 = vpack.c.bf16 %v692, %v692
    %v701 = vpack.c.bf16 %v693, %v693
    %v702 = vpack.c.bf16 %v694, %v694
    %v703 = vpack.c.bf16 %v695, %v695
    %v704 = vld [vmem:[#allocation9] sm:$0xff]
    %v705 = vld [vmem:[#allocation9 + $0x8] sm:$0xff]
    %v706 = vld [vmem:[#allocation9 + $0x10] sm:$0xff]
    %v707 = vld [vmem:[#allocation9 + $0x18] sm:$0xff]
    %v708 = vld [vmem:[#allocation9 + $0x20] sm:$0xff]
    %v709 = vld [vmem:[#allocation9 + $0x28] sm:$0xff]
    %v710 = vld [vmem:[#allocation9 + $0x30] sm:$0xff]
    %v711 = vld [vmem:[#allocation9 + $0x38] sm:$0xff]
    %v712 = vld [vmem:[#allocation9 + $0x40] sm:$0xff]
    %v713 = vld [vmem:[#allocation9 + $0x48] sm:$0xff]
    %v714 = vld [vmem:[#allocation9 + $0x50] sm:$0xff]
    %v715 = vld [vmem:[#allocation9 + $0x58] sm:$0xff]
    %v716 = vld [vmem:[#allocation9 + $0x60] sm:$0xff]
    %v717 = vld [vmem:[#allocation9 + $0x68] sm:$0xff]
    %v718 = vld [vmem:[#allocation9 + $0x70] sm:$0xff]
    %v719 = vld [vmem:[#allocation9 + $0x78] sm:$0xff]
    %v720 = vld [vmem:[#allocation9 + $0x80] sm:$0xff]
    %v721 = vld [vmem:[#allocation9 + $0x88] sm:$0xff]
    %v722 = vld [vmem:[#allocation9 + $0x90] sm:$0xff]
    %v723 = vld [vmem:[#allocation9 + $0x98] sm:$0xff]
    %v724 = vld [vmem:[#allocation9 + $0xa0] sm:$0xff]
    %v725 = vld [vmem:[#allocation9 + $0xa8] sm:$0xff]
    %v726 = vld [vmem:[#allocation9 + $0xb0] sm:$0xff]
    %v727 = vld [vmem:[#allocation9 + $0xb8] sm:$0xff]
    %v728 = vld [vmem:[#allocation9 + $0xc0] sm:$0xff]
    %v729 = vld [vmem:[#allocation9 + $0xc8] sm:$0xff]
    %v730 = vld [vmem:[#allocation9 + $0xd0] sm:$0xff]
    %v731 = vld [vmem:[#allocation9 + $0xd8] sm:$0xff]
    %v732 = vld [vmem:[#allocation9 + $0xe0] sm:$0xff]
    %v733 = vld [vmem:[#allocation9 + $0xe8] sm:$0xff]
    %v734 = vld [vmem:[#allocation9 + $0xf0] sm:$0xff]
    %v735 = vld [vmem:[#allocation9 + $0xf8] sm:$0xff]
    %v736 = vld [vmem:[#allocation9 + $0x100] sm:$0xff]
    %v737 = vld [vmem:[#allocation9 + $0x108] sm:$0xff]
    %v738 = vld [vmem:[#allocation9 + $0x110] sm:$0xff]
    %v739 = vld [vmem:[#allocation9 + $0x118] sm:$0xff]
    %v740 = vld [vmem:[#allocation9 + $0x120] sm:$0xff]
    %v741 = vld [vmem:[#allocation9 + $0x128] sm:$0xff]
    %v742 = vld [vmem:[#allocation9 + $0x130] sm:$0xff]
    %v743 = vld [vmem:[#allocation9 + $0x138] sm:$0xff]
    %v744 = vld [vmem:[#allocation9 + $0x140] sm:$0xff]
    %v745 = vld [vmem:[#allocation9 + $0x148] sm:$0xff]
    %v746 = vld [vmem:[#allocation9 + $0x150] sm:$0xff]
    %v747 = vld [vmem:[#allocation9 + $0x158] sm:$0xff]
    %v748 = vld [vmem:[#allocation9 + $0x160] sm:$0xff]
    %v749 = vld [vmem:[#allocation9 + $0x168] sm:$0xff]
    %v750 = vld [vmem:[#allocation9 + $0x170] sm:$0xff]
    %v751 = vld [vmem:[#allocation9 + $0x178] sm:$0xff]
    %v752 = vld [vmem:[#allocation9 + $0x180] sm:$0xff]
    %v753 = vld [vmem:[#allocation9 + $0x188] sm:$0xff]
    %v754 = vld [vmem:[#allocation9 + $0x190] sm:$0xff]
    %v755 = vld [vmem:[#allocation9 + $0x198] sm:$0xff]
    %v756 = vld [vmem:[#allocation9 + $0x1a0] sm:$0xff]
    %v757 = vld [vmem:[#allocation9 + $0x1a8] sm:$0xff]
    %v758 = vld [vmem:[#allocation9 + $0x1b0] sm:$0xff]
    %v759 = vld [vmem:[#allocation9 + $0x1b8] sm:$0xff]
    %v760 = vld [vmem:[#allocation9 + $0x1c0] sm:$0xff]
    %v761 = vld [vmem:[#allocation9 + $0x1c8] sm:$0xff]
    %v762 = vld [vmem:[#allocation9 + $0x1d0] sm:$0xff]
    %v763 = vld [vmem:[#allocation9 + $0x1d8] sm:$0xff]
    %v764 = vld [vmem:[#allocation9 + $0x1e0] sm:$0xff]
    %v765 = vld [vmem:[#allocation9 + $0x1e8] sm:$0xff]
    %v766 = vld [vmem:[#allocation9 + $0x1f0] sm:$0xff]
    %v767 = vld [vmem:[#allocation9 + $0x1f8] sm:$0xff]
    %v768 = vld [vmem:[#allocation9 + $0x200] sm:$0xff]
    %v769 = vld [vmem:[#allocation9 + $0x208] sm:$0xff]
    %v770 = vld [vmem:[#allocation9 + $0x210] sm:$0xff]
    %v771 = vld [vmem:[#allocation9 + $0x218] sm:$0xff]
    %v772 = vld [vmem:[#allocation9 + $0x220] sm:$0xff]
    %v773 = vld [vmem:[#allocation9 + $0x228] sm:$0xff]
    %v774 = vld [vmem:[#allocation9 + $0x230] sm:$0xff]
    %v775 = vld [vmem:[#allocation9 + $0x238] sm:$0xff]
    %v776 = vld [vmem:[#allocation9 + $0x240] sm:$0xff]
    %v777 = vld [vmem:[#allocation9 + $0x248] sm:$0xff]
    %v778 = vld [vmem:[#allocation9 + $0x250] sm:$0xff]
    %v779 = vld [vmem:[#allocation9 + $0x258] sm:$0xff]
    %v780 = vld [vmem:[#allocation9 + $0x260] sm:$0xff]
    %v781 = vld [vmem:[#allocation9 + $0x268] sm:$0xff]
    %v782 = vld [vmem:[#allocation9 + $0x270] sm:$0xff]
    %v783 = vld [vmem:[#allocation9 + $0x278] sm:$0xff]
    %v784 = vld [vmem:[#allocation9 + $0x280] sm:$0xff]
    %v785 = vld [vmem:[#allocation9 + $0x288] sm:$0xff]
    %v786 = vld [vmem:[#allocation9 + $0x290] sm:$0xff]
    %v787 = vld [vmem:[#allocation9 + $0x298] sm:$0xff]
    %v788 = vld [vmem:[#allocation9 + $0x2a0] sm:$0xff]
    %v789 = vld [vmem:[#allocation9 + $0x2a8] sm:$0xff]
    %v790 = vld [vmem:[#allocation9 + $0x2b0] sm:$0xff]
    %v791 = vld [vmem:[#allocation9 + $0x2b8] sm:$0xff]
    %v792 = vld [vmem:[#allocation9 + $0x2c0] sm:$0xff]
    %v793 = vld [vmem:[#allocation9 + $0x2c8] sm:$0xff]
    %v794 = vld [vmem:[#allocation9 + $0x2d0] sm:$0xff]
    %v795 = vld [vmem:[#allocation9 + $0x2d8] sm:$0xff]
    %v796 = vld [vmem:[#allocation9 + $0x2e0] sm:$0xff]
    %v797 = vld [vmem:[#allocation9 + $0x2e8] sm:$0xff]
    %v798 = vld [vmem:[#allocation9 + $0x2f0] sm:$0xff]
    %v799 = vld [vmem:[#allocation9 + $0x2f8] sm:$0xff]
    %v800 = vld [vmem:[#allocation9 + $0x300] sm:$0xff]
    %v801 = vld [vmem:[#allocation9 + $0x308] sm:$0xff]
    %v802 = vld [vmem:[#allocation9 + $0x310] sm:$0xff]
    %v803 = vld [vmem:[#allocation9 + $0x318] sm:$0xff]
    %v804 = vld [vmem:[#allocation9 + $0x320] sm:$0xff]
    %v805 = vld [vmem:[#allocation9 + $0x328] sm:$0xff]
    %v806 = vld [vmem:[#allocation9 + $0x330] sm:$0xff]
    %v807 = vld [vmem:[#allocation9 + $0x338] sm:$0xff]
    %v808 = vld [vmem:[#allocation9 + $0x340] sm:$0xff]
    %v809 = vld [vmem:[#allocation9 + $0x348] sm:$0xff]
    %v810 = vld [vmem:[#allocation9 + $0x350] sm:$0xff]
    %v811 = vld [vmem:[#allocation9 + $0x358] sm:$0xff]
    %v812 = vld [vmem:[#allocation9 + $0x360] sm:$0xff]
    %v813 = vld [vmem:[#allocation9 + $0x368] sm:$0xff]
    %v814 = vld [vmem:[#allocation9 + $0x370] sm:$0xff]
    %v815 = vld [vmem:[#allocation9 + $0x378] sm:$0xff]
    %v816 = vld [vmem:[#allocation9 + $0x380] sm:$0xff]
    %v817 = vld [vmem:[#allocation9 + $0x388] sm:$0xff]
    %v818 = vld [vmem:[#allocation9 + $0x390] sm:$0xff]
    %v819 = vld [vmem:[#allocation9 + $0x398] sm:$0xff]
    %v820 = vld [vmem:[#allocation9 + $0x3a0] sm:$0xff]
    %v821 = vld [vmem:[#allocation9 + $0x3a8] sm:$0xff]
    %v822 = vld [vmem:[#allocation9 + $0x3b0] sm:$0xff]
    %v823 = vld [vmem:[#allocation9 + $0x3b8] sm:$0xff]
    %v824 = vld [vmem:[#allocation9 + $0x3c0] sm:$0xff]
    %v825 = vld [vmem:[#allocation9 + $0x3c8] sm:$0xff]
    %v826 = vld [vmem:[#allocation9 + $0x3d0] sm:$0xff]
    %v827 = vld [vmem:[#allocation9 + $0x3d8] sm:$0xff]
    %v828 = vld [vmem:[#allocation9 + $0x3e0] sm:$0xff]
    %v829 = vld [vmem:[#allocation9 + $0x3e8] sm:$0xff]
    %v830 = vld [vmem:[#allocation9 + $0x3f0] sm:$0xff]
    %v831 = vld [vmem:[#allocation9 + $0x3f8] sm:$0xff]
    %v832 = vld [vmem:[#allocation9 + $0x400] sm:$0xff]
    %v833 = vld [vmem:[#allocation9 + $0x408] sm:$0xff]
    %v834 = vld [vmem:[#allocation9 + $0x410] sm:$0xff]
    %v835 = vld [vmem:[#allocation9 + $0x418] sm:$0xff]
    %v836 = vld [vmem:[#allocation9 + $0x420] sm:$0xff]
    %v837 = vld [vmem:[#allocation9 + $0x428] sm:$0xff]
    %v838 = vld [vmem:[#allocation9 + $0x430] sm:$0xff]
    %v839 = vld [vmem:[#allocation9 + $0x438] sm:$0xff]
    %v840 = vld [vmem:[#allocation9 + $0x440] sm:$0xff]
    %v841 = vld [vmem:[#allocation9 + $0x448] sm:$0xff]
    %v842 = vld [vmem:[#allocation9 + $0x450] sm:$0xff]
    %v843 = vld [vmem:[#allocation9 + $0x458] sm:$0xff]
    %v844 = vld [vmem:[#allocation9 + $0x460] sm:$0xff]
    %v845 = vld [vmem:[#allocation9 + $0x468] sm:$0xff]
    %v846 = vld [vmem:[#allocation9 + $0x470] sm:$0xff]
    %v847 = vld [vmem:[#allocation9 + $0x478] sm:$0xff]
    %v848 = vld [vmem:[#allocation9 + $0x480] sm:$0xff]
    %v849 = vld [vmem:[#allocation9 + $0x488] sm:$0xff]
    %v850 = vld [vmem:[#allocation9 + $0x490] sm:$0xff]
    %v851 = vld [vmem:[#allocation9 + $0x498] sm:$0xff]
    %v852 = vld [vmem:[#allocation9 + $0x4a0] sm:$0xff]
    %v853 = vld [vmem:[#allocation9 + $0x4a8] sm:$0xff]
    %v854 = vld [vmem:[#allocation9 + $0x4b0] sm:$0xff]
    %v855 = vld [vmem:[#allocation9 + $0x4b8] sm:$0xff]
    %v856 = vld [vmem:[#allocation9 + $0x4c0] sm:$0xff]
    %v857 = vld [vmem:[#allocation9 + $0x4c8] sm:$0xff]
    %v858 = vld [vmem:[#allocation9 + $0x4d0] sm:$0xff]
    %v859 = vld [vmem:[#allocation9 + $0x4d8] sm:$0xff]
    %v860 = vld [vmem:[#allocation9 + $0x4e0] sm:$0xff]
    %v861 = vld [vmem:[#allocation9 + $0x4e8] sm:$0xff]
    %v862 = vld [vmem:[#allocation9 + $0x4f0] sm:$0xff]
    %v863 = vld [vmem:[#allocation9 + $0x4f8] sm:$0xff]
    %v864 = vld [vmem:[#allocation9 + $0x500] sm:$0xff]
    %v865 = vld [vmem:[#allocation9 + $0x508] sm:$0xff]
    %v866 = vld [vmem:[#allocation9 + $0x510] sm:$0xff]
    %v867 = vld [vmem:[#allocation9 + $0x518] sm:$0xff]
    %v868 = vld [vmem:[#allocation9 + $0x520] sm:$0xff]
    %v869 = vld [vmem:[#allocation9 + $0x528] sm:$0xff]
    %v870 = vld [vmem:[#allocation9 + $0x530] sm:$0xff]
    %v871 = vld [vmem:[#allocation9 + $0x538] sm:$0xff]
    %v872 = vld [vmem:[#allocation9 + $0x540] sm:$0xff]
    %v873 = vld [vmem:[#allocation9 + $0x548] sm:$0xff]
    %v874 = vld [vmem:[#allocation9 + $0x550] sm:$0xff]
    %v875 = vld [vmem:[#allocation9 + $0x558] sm:$0xff]
    %v876 = vld [vmem:[#allocation9 + $0x560] sm:$0xff]
    %v877 = vld [vmem:[#allocation9 + $0x568] sm:$0xff]
    %v878 = vld [vmem:[#allocation9 + $0x570] sm:$0xff]
    %v879 = vld [vmem:[#allocation9 + $0x578] sm:$0xff]
    %v880 = vld [vmem:[#allocation9 + $0x580] sm:$0xff]
    %v881 = vld [vmem:[#allocation9 + $0x588] sm:$0xff]
    %v882 = vld [vmem:[#allocation9 + $0x590] sm:$0xff]
    %v883 = vld [vmem:[#allocation9 + $0x598] sm:$0xff]
    %v884 = vld [vmem:[#allocation9 + $0x5a0] sm:$0xff]
    %v885 = vld [vmem:[#allocation9 + $0x5a8] sm:$0xff]
    %v886 = vld [vmem:[#allocation9 + $0x5b0] sm:$0xff]
    %v887 = vld [vmem:[#allocation9 + $0x5b8] sm:$0xff]
    %v888 = vld [vmem:[#allocation9 + $0x5c0] sm:$0xff]
    %v889 = vld [vmem:[#allocation9 + $0x5c8] sm:$0xff]
    %v890 = vld [vmem:[#allocation9 + $0x5d0] sm:$0xff]
    %v891 = vld [vmem:[#allocation9 + $0x5d8] sm:$0xff]
    %v892 = vld [vmem:[#allocation9 + $0x5e0] sm:$0xff]
    %v893 = vld [vmem:[#allocation9 + $0x5e8] sm:$0xff]
    %v894 = vld [vmem:[#allocation9 + $0x5f0] sm:$0xff]
    %v895 = vld [vmem:[#allocation9 + $0x5f8] sm:$0xff]
    %v896 = vld [vmem:[#allocation9 + $0x600] sm:$0xff]
    %v897 = vld [vmem:[#allocation9 + $0x608] sm:$0xff]
    %v898 = vld [vmem:[#allocation9 + $0x610] sm:$0xff]
    %v899 = vld [vmem:[#allocation9 + $0x618] sm:$0xff]
    %v900 = vld [vmem:[#allocation9 + $0x620] sm:$0xff]
    %v901 = vld [vmem:[#allocation9 + $0x628] sm:$0xff]
    %v902 = vld [vmem:[#allocation9 + $0x630] sm:$0xff]
    %v903 = vld [vmem:[#allocation9 + $0x638] sm:$0xff]
    %v904 = vld [vmem:[#allocation9 + $0x640] sm:$0xff]
    %v905 = vld [vmem:[#allocation9 + $0x648] sm:$0xff]
    %v906 = vld [vmem:[#allocation9 + $0x650] sm:$0xff]
    %v907 = vld [vmem:[#allocation9 + $0x658] sm:$0xff]
    %v908 = vld [vmem:[#allocation9 + $0x660] sm:$0xff]
    %v909 = vld [vmem:[#allocation9 + $0x668] sm:$0xff]
    %v910 = vld [vmem:[#allocation9 + $0x670] sm:$0xff]
    %v911 = vld [vmem:[#allocation9 + $0x678] sm:$0xff]
    %v912 = vld [vmem:[#allocation9 + $0x680] sm:$0xff]
    %v913 = vld [vmem:[#allocation9 + $0x688] sm:$0xff]
    %v914 = vld [vmem:[#allocation9 + $0x690] sm:$0xff]
    %v915 = vld [vmem:[#allocation9 + $0x698] sm:$0xff]
    %v916 = vld [vmem:[#allocation9 + $0x6a0] sm:$0xff]
    %v917 = vld [vmem:[#allocation9 + $0x6a8] sm:$0xff]
    %v918 = vld [vmem:[#allocation9 + $0x6b0] sm:$0xff]
    %v919 = vld [vmem:[#allocation9 + $0x6b8] sm:$0xff]
    %v920 = vld [vmem:[#allocation9 + $0x6c0] sm:$0xff]
    %v921 = vld [vmem:[#allocation9 + $0x6c8] sm:$0xff]
    %v922 = vld [vmem:[#allocation9 + $0x6d0] sm:$0xff]
    %v923 = vld [vmem:[#allocation9 + $0x6d8] sm:$0xff]
    %v924 = vld [vmem:[#allocation9 + $0x6e0] sm:$0xff]
    %v925 = vld [vmem:[#allocation9 + $0x6e8] sm:$0xff]
    %v926 = vld [vmem:[#allocation9 + $0x6f0] sm:$0xff]
    %v927 = vld [vmem:[#allocation9 + $0x6f8] sm:$0xff]
    %v928 = vld [vmem:[#allocation9 + $0x700] sm:$0xff]
    %v929 = vld [vmem:[#allocation9 + $0x708] sm:$0xff]
    %v930 = vld [vmem:[#allocation9 + $0x710] sm:$0xff]
    %v931 = vld [vmem:[#allocation9 + $0x718] sm:$0xff]
    %v932 = vld [vmem:[#allocation9 + $0x720] sm:$0xff]
    %v933 = vld [vmem:[#allocation9 + $0x728] sm:$0xff]
    %v934 = vld [vmem:[#allocation9 + $0x730] sm:$0xff]
    %v935 = vld [vmem:[#allocation9 + $0x738] sm:$0xff]
    %v936 = vld [vmem:[#allocation9 + $0x740] sm:$0xff]
    %v937 = vld [vmem:[#allocation9 + $0x748] sm:$0xff]
    %v938 = vld [vmem:[#allocation9 + $0x750] sm:$0xff]
    %v939 = vld [vmem:[#allocation9 + $0x758] sm:$0xff]
    %v940 = vld [vmem:[#allocation9 + $0x760] sm:$0xff]
    %v941 = vld [vmem:[#allocation9 + $0x768] sm:$0xff]
    %v942 = vld [vmem:[#allocation9 + $0x770] sm:$0xff]
    %v943 = vld [vmem:[#allocation9 + $0x778] sm:$0xff]
    %v944 = vld [vmem:[#allocation9 + $0x780] sm:$0xff]
    %v945 = vld [vmem:[#allocation9 + $0x788] sm:$0xff]
    %v946 = vld [vmem:[#allocation9 + $0x790] sm:$0xff]
    %v947 = vld [vmem:[#allocation9 + $0x798] sm:$0xff]
    %v948 = vld [vmem:[#allocation9 + $0x7a0] sm:$0xff]
    %v949 = vld [vmem:[#allocation9 + $0x7a8] sm:$0xff]
    %v950 = vld [vmem:[#allocation9 + $0x7b0] sm:$0xff]
    %v951 = vld [vmem:[#allocation9 + $0x7b8] sm:$0xff]
    %v952 = vld [vmem:[#allocation9 + $0x7c0] sm:$0xff]
    %v953 = vld [vmem:[#allocation9 + $0x7c8] sm:$0xff]
    %v954 = vld [vmem:[#allocation9 + $0x7d0] sm:$0xff]
    %v955 = vld [vmem:[#allocation9 + $0x7d8] sm:$0xff]
    %v956 = vld [vmem:[#allocation9 + $0x7e0] sm:$0xff]
    %v957 = vld [vmem:[#allocation9 + $0x7e8] sm:$0xff]
    %v958 = vld [vmem:[#allocation9 + $0x7f0] sm:$0xff]
    %v959 = vld [vmem:[#allocation9 + $0x7f8] sm:$0xff]
    %v960 = vld [vmem:[%s4] sm:$0xf]
    %v962 = vlaneseq
    %v963 = vshrl.u32 %v962, 7
    %v964 = vsub.s32 0, %v963
    %v965 = vrot.slane %v960, %v964
    %v966 = vlaneseq
    %v967 = vshrl.u32 %v966, 7
    %v968 = vsub.s32 1, %v967
    %v969 = vrot.slane %v960, %v968
    %v970 = vlaneseq
    %v971 = vshrl.u32 %v970, 7
    %v972 = vsub.s32 2, %v971
    %v973 = vrot.slane %v960, %v972
    %v974 = vlaneseq
    %v975 = vshrl.u32 %v974, 7
    %v976 = vsub.s32 3, %v975
    %v977 = vrot.slane %v960, %v976
    %v1238 = vunpack.c.l.b16 %v704
    %v1239 = vunpack.c.h.b16 %v704
    %v1240 = vunpack.c.l.b16 %v705
    %v1241 = vunpack.c.h.b16 %v705
    %v1242 = vunpack.c.l.b16 %v706
    %v1243 = vunpack.c.h.b16 %v706
    %v1244 = vunpack.c.l.b16 %v707
    %v1245 = vunpack.c.h.b16 %v707
    %v1246 = vunpack.c.l.b16 %v708
    %v1247 = vunpack.c.h.b16 %v708
    %v1248 = vunpack.c.l.b16 %v709
    %v1249 = vunpack.c.h.b16 %v709
    %v1250 = vunpack.c.l.b16 %v710
    %v1251 = vunpack.c.h.b16 %v710
    %v1252 = vunpack.c.l.b16 %v711
    %v1253 = vunpack.c.h.b16 %v711
    %v1254 = vunpack.c.l.b16 %v712
    %v1255 = vunpack.c.h.b16 %v712
    %v1256 = vunpack.c.l.b16 %v713
    %v1257 = vunpack.c.h.b16 %v713
    %v1258 = vunpack.c.l.b16 %v714
    %v1259 = vunpack.c.h.b16 %v714
    %v1260 = vunpack.c.l.b16 %v715
    %v1261 = vunpack.c.h.b16 %v715
    %v1262 = vunpack.c.l.b16 %v716
    %v1263 = vunpack.c.h.b16 %v716
    %v1264 = vunpack.c.l.b16 %v717
    %v1265 = vunpack.c.h.b16 %v717
    %v1266 = vunpack.c.l.b16 %v718
    %v1267 = vunpack.c.h.b16 %v718
    %v1268 = vunpack.c.l.b16 %v719
    %v1269 = vunpack.c.h.b16 %v719
    %v1270 = vunpack.c.l.b16 %v720
    %v1271 = vunpack.c.h.b16 %v720
    %v1272 = vunpack.c.l.b16 %v721
    %v1273 = vunpack.c.h.b16 %v721
    %v1274 = vunpack.c.l.b16 %v722
    %v1275 = vunpack.c.h.b16 %v722
    %v1276 = vunpack.c.l.b16 %v723
    %v1277 = vunpack.c.h.b16 %v723
    %v1278 = vunpack.c.l.b16 %v724
    %v1279 = vunpack.c.h.b16 %v724
    %v1280 = vunpack.c.l.b16 %v725
    %v1281 = vunpack.c.h.b16 %v725
    %v1282 = vunpack.c.l.b16 %v726
    %v1283 = vunpack.c.h.b16 %v726
    %v1284 = vunpack.c.l.b16 %v727
    %v1285 = vunpack.c.h.b16 %v727
    %v1286 = vunpack.c.l.b16 %v728
    %v1287 = vunpack.c.h.b16 %v728
    %v1288 = vunpack.c.l.b16 %v729
    %v1289 = vunpack.c.h.b16 %v729
    %v1290 = vunpack.c.l.b16 %v730
    %v1291 = vunpack.c.h.b16 %v730
    %v1292 = vunpack.c.l.b16 %v731
    %v1293 = vunpack.c.h.b16 %v731
    %v1294 = vunpack.c.l.b16 %v732
    %v1295 = vunpack.c.h.b16 %v732
    %v1296 = vunpack.c.l.b16 %v733
    %v1297 = vunpack.c.h.b16 %v733
    %v1298 = vunpack.c.l.b16 %v734
    %v1299 = vunpack.c.h.b16 %v734
    %v1300 = vunpack.c.l.b16 %v735
    %v1301 = vunpack.c.h.b16 %v735
    %v1302 = vunpack.c.l.b16 %v736
    %v1303 = vunpack.c.h.b16 %v736
    %v1304 = vunpack.c.l.b16 %v737
    %v1305 = vunpack.c.h.b16 %v737
    %v1306 = vunpack.c.l.b16 %v738
    %v1307 = vunpack.c.h.b16 %v738
    %v1308 = vunpack.c.l.b16 %v739
    %v1309 = vunpack.c.h.b16 %v739
    %v1310 = vunpack.c.l.b16 %v740
    %v1311 = vunpack.c.h.b16 %v740
    %v1312 = vunpack.c.l.b16 %v741
    %v1313 = vunpack.c.h.b16 %v741
    %v1314 = vunpack.c.l.b16 %v742
    %v1315 = vunpack.c.h.b16 %v742
    %v1316 = vunpack.c.l.b16 %v743
    %v1317 = vunpack.c.h.b16 %v743
    %v1318 = vunpack.c.l.b16 %v744
    %v1319 = vunpack.c.h.b16 %v744
    %v1320 = vunpack.c.l.b16 %v745
    %v1321 = vunpack.c.h.b16 %v745
    %v1322 = vunpack.c.l.b16 %v746
    %v1323 = vunpack.c.h.b16 %v746
    %v1324 = vunpack.c.l.b16 %v747
    %v1325 = vunpack.c.h.b16 %v747
    %v1326 = vunpack.c.l.b16 %v748
    %v1327 = vunpack.c.h.b16 %v748
    %v1328 = vunpack.c.l.b16 %v749
    %v1329 = vunpack.c.h.b16 %v749
    %v1330 = vunpack.c.l.b16 %v750
    %v1331 = vunpack.c.h.b16 %v750
    %v1332 = vunpack.c.l.b16 %v751
    %v1333 = vunpack.c.h.b16 %v751
    %v1334 = vunpack.c.l.b16 %v752
    %v1335 = vunpack.c.h.b16 %v752
    %v1336 = vunpack.c.l.b16 %v753
    %v1337 = vunpack.c.h.b16 %v753
    %v1338 = vunpack.c.l.b16 %v754
    %v1339 = vunpack.c.h.b16 %v754
    %v1340 = vunpack.c.l.b16 %v755
    %v1341 = vunpack.c.h.b16 %v755
    %v1342 = vunpack.c.l.b16 %v756
    %v1343 = vunpack.c.h.b16 %v756
    %v1344 = vunpack.c.l.b16 %v757
    %v1345 = vunpack.c.h.b16 %v757
    %v1346 = vunpack.c.l.b16 %v758
    %v1347 = vunpack.c.h.b16 %v758
    %v1348 = vunpack.c.l.b16 %v759
    %v1349 = vunpack.c.h.b16 %v759
    %v1350 = vunpack.c.l.b16 %v760
    %v1351 = vunpack.c.h.b16 %v760
    %v1352 = vunpack.c.l.b16 %v761
    %v1353 = vunpack.c.h.b16 %v761
    %v1354 = vunpack.c.l.b16 %v762
    %v1355 = vunpack.c.h.b16 %v762
    %v1356 = vunpack.c.l.b16 %v763
    %v1357 = vunpack.c.h.b16 %v763
    %v1358 = vunpack.c.l.b16 %v764
    %v1359 = vunpack.c.h.b16 %v764
    %v1360 = vunpack.c.l.b16 %v765
    %v1361 = vunpack.c.h.b16 %v765
    %v1362 = vunpack.c.l.b16 %v766
    %v1363 = vunpack.c.h.b16 %v766
    %v1364 = vunpack.c.l.b16 %v767
    %v1365 = vunpack.c.h.b16 %v767
    %v1366 = vunpack.c.l.b16 %v768
    %v1367 = vunpack.c.h.b16 %v768
    %v1368 = vunpack.c.l.b16 %v769
    %v1369 = vunpack.c.h.b16 %v769
    %v1370 = vunpack.c.l.b16 %v770
    %v1371 = vunpack.c.h.b16 %v770
    %v1372 = vunpack.c.l.b16 %v771
    %v1373 = vunpack.c.h.b16 %v771
    %v1374 = vunpack.c.l.b16 %v772
    %v1375 = vunpack.c.h.b16 %v772
    %v1376 = vunpack.c.l.b16 %v773
    %v1377 = vunpack.c.h.b16 %v773
    %v1378 = vunpack.c.l.b16 %v774
    %v1379 = vunpack.c.h.b16 %v774
    %v1380 = vunpack.c.l.b16 %v775
    %v1381 = vunpack.c.h.b16 %v775
    %v1382 = vunpack.c.l.b16 %v776
    %v1383 = vunpack.c.h.b16 %v776
    %v1384 = vunpack.c.l.b16 %v777
    %v1385 = vunpack.c.h.b16 %v777
    %v1386 = vunpack.c.l.b16 %v778
    %v1387 = vunpack.c.h.b16 %v778
    %v1388 = vunpack.c.l.b16 %v779
    %v1389 = vunpack.c.h.b16 %v779
    %v1390 = vunpack.c.l.b16 %v780
    %v1391 = vunpack.c.h.b16 %v780
    %v1392 = vunpack.c.l.b16 %v781
    %v1393 = vunpack.c.h.b16 %v781
    %v1394 = vunpack.c.l.b16 %v782
    %v1395 = vunpack.c.h.b16 %v782
    %v1396 = vunpack.c.l.b16 %v783
    %v1397 = vunpack.c.h.b16 %v783
    %v1398 = vunpack.c.l.b16 %v784
    %v1399 = vunpack.c.h.b16 %v784
    %v1400 = vunpack.c.l.b16 %v785
    %v1401 = vunpack.c.h.b16 %v785
    %v1402 = vunpack.c.l.b16 %v786
    %v1403 = vunpack.c.h.b16 %v786
    %v1404 = vunpack.c.l.b16 %v787
    %v1405 = vunpack.c.h.b16 %v787
    %v1406 = vunpack.c.l.b16 %v788
    %v1407 = vunpack.c.h.b16 %v788
    %v1408 = vunpack.c.l.b16 %v789
    %v1409 = vunpack.c.h.b16 %v789
    %v1410 = vunpack.c.l.b16 %v790
    %v1411 = vunpack.c.h.b16 %v790
    %v1412 = vunpack.c.l.b16 %v791
    %v1413 = vunpack.c.h.b16 %v791
    %v1414 = vunpack.c.l.b16 %v792
    %v1415 = vunpack.c.h.b16 %v792
    %v1416 = vunpack.c.l.b16 %v793
    %v1417 = vunpack.c.h.b16 %v793
    %v1418 = vunpack.c.l.b16 %v794
    %v1419 = vunpack.c.h.b16 %v794
    %v1420 = vunpack.c.l.b16 %v795
    %v1421 = vunpack.c.h.b16 %v795
    %v1422 = vunpack.c.l.b16 %v796
    %v1423 = vunpack.c.h.b16 %v796
    %v1424 = vunpack.c.l.b16 %v797
    %v1425 = vunpack.c.h.b16 %v797
    %v1426 = vunpack.c.l.b16 %v798
    %v1427 = vunpack.c.h.b16 %v798
    %v1428 = vunpack.c.l.b16 %v799
    %v1429 = vunpack.c.h.b16 %v799
    %v1430 = vunpack.c.l.b16 %v800
    %v1431 = vunpack.c.h.b16 %v800
    %v1432 = vunpack.c.l.b16 %v801
    %v1433 = vunpack.c.h.b16 %v801
    %v1434 = vunpack.c.l.b16 %v802
    %v1435 = vunpack.c.h.b16 %v802
    %v1436 = vunpack.c.l.b16 %v803
    %v1437 = vunpack.c.h.b16 %v803
    %v1438 = vunpack.c.l.b16 %v804
    %v1439 = vunpack.c.h.b16 %v804
    %v1440 = vunpack.c.l.b16 %v805
    %v1441 = vunpack.c.h.b16 %v805
    %v1442 = vunpack.c.l.b16 %v806
    %v1443 = vunpack.c.h.b16 %v806
    %v1444 = vunpack.c.l.b16 %v807
    %v1445 = vunpack.c.h.b16 %v807
    %v1446 = vunpack.c.l.b16 %v808
    %v1447 = vunpack.c.h.b16 %v808
    %v1448 = vunpack.c.l.b16 %v809
    %v1449 = vunpack.c.h.b16 %v809
    %v1450 = vunpack.c.l.b16 %v810
    %v1451 = vunpack.c.h.b16 %v810
    %v1452 = vunpack.c.l.b16 %v811
    %v1453 = vunpack.c.h.b16 %v811
    %v1454 = vunpack.c.l.b16 %v812
    %v1455 = vunpack.c.h.b16 %v812
    %v1456 = vunpack.c.l.b16 %v813
    %v1457 = vunpack.c.h.b16 %v813
    %v1458 = vunpack.c.l.b16 %v814
    %v1459 = vunpack.c.h.b16 %v814
    %v1460 = vunpack.c.l.b16 %v815
    %v1461 = vunpack.c.h.b16 %v815
    %v1462 = vunpack.c.l.b16 %v816
    %v1463 = vunpack.c.h.b16 %v816
    %v1464 = vunpack.c.l.b16 %v817
    %v1465 = vunpack.c.h.b16 %v817
    %v1466 = vunpack.c.l.b16 %v818
    %v1467 = vunpack.c.h.b16 %v818
    %v1468 = vunpack.c.l.b16 %v819
    %v1469 = vunpack.c.h.b16 %v819
    %v1470 = vunpack.c.l.b16 %v820
    %v1471 = vunpack.c.h.b16 %v820
    %v1472 = vunpack.c.l.b16 %v821
    %v1473 = vunpack.c.h.b16 %v821
    %v1474 = vunpack.c.l.b16 %v822
    %v1475 = vunpack.c.h.b16 %v822
    %v1476 = vunpack.c.l.b16 %v823
    %v1477 = vunpack.c.h.b16 %v823
    %v1478 = vunpack.c.l.b16 %v824
    %v1479 = vunpack.c.h.b16 %v824
    %v1480 = vunpack.c.l.b16 %v825
    %v1481 = vunpack.c.h.b16 %v825
    %v1482 = vunpack.c.l.b16 %v826
    %v1483 = vunpack.c.h.b16 %v826
    %v1484 = vunpack.c.l.b16 %v827
    %v1485 = vunpack.c.h.b16 %v827
    %v1486 = vunpack.c.l.b16 %v828
    %v1487 = vunpack.c.h.b16 %v828
    %v1488 = vunpack.c.l.b16 %v829
    %v1489 = vunpack.c.h.b16 %v829
    %v1490 = vunpack.c.l.b16 %v830
    %v1491 = vunpack.c.h.b16 %v830
    %v1492 = vunpack.c.l.b16 %v831
    %v1493 = vunpack.c.h.b16 %v831
    %v1494 = vunpack.c.l.b16 %v832
    %v1495 = vunpack.c.h.b16 %v832
    %v1496 = vunpack.c.l.b16 %v833
    %v1497 = vunpack.c.h.b16 %v833
    %v1498 = vunpack.c.l.b16 %v834
    %v1499 = vunpack.c.h.b16 %v834
    %v1500 = vunpack.c.l.b16 %v835
    %v1501 = vunpack.c.h.b16 %v835
    %v1502 = vunpack.c.l.b16 %v836
    %v1503 = vunpack.c.h.b16 %v836
    %v1504 = vunpack.c.l.b16 %v837
    %v1505 = vunpack.c.h.b16 %v837
    %v1506 = vunpack.c.l.b16 %v838
    %v1507 = vunpack.c.h.b16 %v838
    %v1508 = vunpack.c.l.b16 %v839
    %v1509 = vunpack.c.h.b16 %v839
    %v1510 = vunpack.c.l.b16 %v840
    %v1511 = vunpack.c.h.b16 %v840
    %v1512 = vunpack.c.l.b16 %v841
    %v1513 = vunpack.c.h.b16 %v841
    %v1514 = vunpack.c.l.b16 %v842
    %v1515 = vunpack.c.h.b16 %v842
    %v1516 = vunpack.c.l.b16 %v843
    %v1517 = vunpack.c.h.b16 %v843
    %v1518 = vunpack.c.l.b16 %v844
    %v1519 = vunpack.c.h.b16 %v844
    %v1520 = vunpack.c.l.b16 %v845
    %v1521 = vunpack.c.h.b16 %v845
    %v1522 = vunpack.c.l.b16 %v846
    %v1523 = vunpack.c.h.b16 %v846
    %v1524 = vunpack.c.l.b16 %v847
    %v1525 = vunpack.c.h.b16 %v847
    %v1526 = vunpack.c.l.b16 %v848
    %v1527 = vunpack.c.h.b16 %v848
    %v1528 = vunpack.c.l.b16 %v849
    %v1529 = vunpack.c.h.b16 %v849
    %v1530 = vunpack.c.l.b16 %v850
    %v1531 = vunpack.c.h.b16 %v850
    %v1532 = vunpack.c.l.b16 %v851
    %v1533 = vunpack.c.h.b16 %v851
    %v1534 = vunpack.c.l.b16 %v852
    %v1535 = vunpack.c.h.b16 %v852
    %v1536 = vunpack.c.l.b16 %v853
    %v1537 = vunpack.c.h.b16 %v853
    %v1538 = vunpack.c.l.b16 %v854
    %v1539 = vunpack.c.h.b16 %v854
    %v1540 = vunpack.c.l.b16 %v855
    %v1541 = vunpack.c.h.b16 %v855
    %v1542 = vunpack.c.l.b16 %v856
    %v1543 = vunpack.c.h.b16 %v856
    %v1544 = vunpack.c.l.b16 %v857
    %v1545 = vunpack.c.h.b16 %v857
    %v1546 = vunpack.c.l.b16 %v858
    %v1547 = vunpack.c.h.b16 %v858
    %v1548 = vunpack.c.l.b16 %v859
    %v1549 = vunpack.c.h.b16 %v859
    %v1550 = vunpack.c.l.b16 %v860
    %v1551 = vunpack.c.h.b16 %v860
    %v1552 = vunpack.c.l.b16 %v861
    %v1553 = vunpack.c.h.b16 %v861
    %v1554 = vunpack.c.l.b16 %v862
    %v1555 = vunpack.c.h.b16 %v862
    %v1556 = vunpack.c.l.b16 %v863
    %v1557 = vunpack.c.h.b16 %v863
    %v1558 = vunpack.c.l.b16 %v864
    %v1559 = vunpack.c.h.b16 %v864
    %v1560 = vunpack.c.l.b16 %v865
    %v1561 = vunpack.c.h.b16 %v865
    %v1562 = vunpack.c.l.b16 %v866
    %v1563 = vunpack.c.h.b16 %v866
    %v1564 = vunpack.c.l.b16 %v867
    %v1565 = vunpack.c.h.b16 %v867
    %v1566 = vunpack.c.l.b16 %v868
    %v1567 = vunpack.c.h.b16 %v868
    %v1568 = vunpack.c.l.b16 %v869
    %v1569 = vunpack.c.h.b16 %v869
    %v1570 = vunpack.c.l.b16 %v870
    %v1571 = vunpack.c.h.b16 %v870
    %v1572 = vunpack.c.l.b16 %v871
    %v1573 = vunpack.c.h.b16 %v871
    %v1574 = vunpack.c.l.b16 %v872
    %v1575 = vunpack.c.h.b16 %v872
    %v1576 = vunpack.c.l.b16 %v873
    %v1577 = vunpack.c.h.b16 %v873
    %v1578 = vunpack.c.l.b16 %v874
    %v1579 = vunpack.c.h.b16 %v874
    %v1580 = vunpack.c.l.b16 %v875
    %v1581 = vunpack.c.h.b16 %v875
    %v1582 = vunpack.c.l.b16 %v876
    %v1583 = vunpack.c.h.b16 %v876
    %v1584 = vunpack.c.l.b16 %v877
    %v1585 = vunpack.c.h.b16 %v877
    %v1586 = vunpack.c.l.b16 %v878
    %v1587 = vunpack.c.h.b16 %v878
    %v1588 = vunpack.c.l.b16 %v879
    %v1589 = vunpack.c.h.b16 %v879
    %v1590 = vunpack.c.l.b16 %v880
    %v1591 = vunpack.c.h.b16 %v880
    %v1592 = vunpack.c.l.b16 %v881
    %v1593 = vunpack.c.h.b16 %v881
    %v1594 = vunpack.c.l.b16 %v882
    %v1595 = vunpack.c.h.b16 %v882
    %v1596 = vunpack.c.l.b16 %v883
    %v1597 = vunpack.c.h.b16 %v883
    %v1598 = vunpack.c.l.b16 %v884
    %v1599 = vunpack.c.h.b16 %v884
    %v1600 = vunpack.c.l.b16 %v885
    %v1601 = vunpack.c.h.b16 %v885
    %v1602 = vunpack.c.l.b16 %v886
    %v1603 = vunpack.c.h.b16 %v886
    %v1604 = vunpack.c.l.b16 %v887
    %v1605 = vunpack.c.h.b16 %v887
    %v1606 = vunpack.c.l.b16 %v888
    %v1607 = vunpack.c.h.b16 %v888
    %v1608 = vunpack.c.l.b16 %v889
    %v1609 = vunpack.c.h.b16 %v889
    %v1610 = vunpack.c.l.b16 %v890
    %v1611 = vunpack.c.h.b16 %v890
    %v1612 = vunpack.c.l.b16 %v891
    %v1613 = vunpack.c.h.b16 %v891
    %v1614 = vunpack.c.l.b16 %v892
    %v1615 = vunpack.c.h.b16 %v892
    %v1616 = vunpack.c.l.b16 %v893
    %v1617 = vunpack.c.h.b16 %v893
    %v1618 = vunpack.c.l.b16 %v894
    %v1619 = vunpack.c.h.b16 %v894
    %v1620 = vunpack.c.l.b16 %v895
    %v1621 = vunpack.c.h.b16 %v895
    %v1622 = vunpack.c.l.b16 %v896
    %v1623 = vunpack.c.h.b16 %v896
    %v1624 = vunpack.c.l.b16 %v897
    %v1625 = vunpack.c.h.b16 %v897
    %v1626 = vunpack.c.l.b16 %v898
    %v1627 = vunpack.c.h.b16 %v898
    %v1628 = vunpack.c.l.b16 %v899
    %v1629 = vunpack.c.h.b16 %v899
    %v1630 = vunpack.c.l.b16 %v900
    %v1631 = vunpack.c.h.b16 %v900
    %v1632 = vunpack.c.l.b16 %v901
    %v1633 = vunpack.c.h.b16 %v901
    %v1634 = vunpack.c.l.b16 %v902
    %v1635 = vunpack.c.h.b16 %v902
    %v1636 = vunpack.c.l.b16 %v903
    %v1637 = vunpack.c.h.b16 %v903
    %v1638 = vunpack.c.l.b16 %v904
    %v1639 = vunpack.c.h.b16 %v904
    %v1640 = vunpack.c.l.b16 %v905
    %v1641 = vunpack.c.h.b16 %v905
    %v1642 = vunpack.c.l.b16 %v906
    %v1643 = vunpack.c.h.b16 %v906
    %v1644 = vunpack.c.l.b16 %v907
    %v1645 = vunpack.c.h.b16 %v907
    %v1646 = vunpack.c.l.b16 %v908
    %v1647 = vunpack.c.h.b16 %v908
    %v1648 = vunpack.c.l.b16 %v909
    %v1649 = vunpack.c.h.b16 %v909
    %v1650 = vunpack.c.l.b16 %v910
    %v1651 = vunpack.c.h.b16 %v910
    %v1652 = vunpack.c.l.b16 %v911
    %v1653 = vunpack.c.h.b16 %v911
    %v1654 = vunpack.c.l.b16 %v912
    %v1655 = vunpack.c.h.b16 %v912
    %v1656 = vunpack.c.l.b16 %v913
    %v1657 = vunpack.c.h.b16 %v913
    %v1658 = vunpack.c.l.b16 %v914
    %v1659 = vunpack.c.h.b16 %v914
    %v1660 = vunpack.c.l.b16 %v915
    %v1661 = vunpack.c.h.b16 %v915
    %v1662 = vunpack.c.l.b16 %v916
    %v1663 = vunpack.c.h.b16 %v916
    %v1664 = vunpack.c.l.b16 %v917
    %v1665 = vunpack.c.h.b16 %v917
    %v1666 = vunpack.c.l.b16 %v918
    %v1667 = vunpack.c.h.b16 %v918
    %v1668 = vunpack.c.l.b16 %v919
    %v1669 = vunpack.c.h.b16 %v919
    %v1670 = vunpack.c.l.b16 %v920
    %v1671 = vunpack.c.h.b16 %v920
    %v1672 = vunpack.c.l.b16 %v921
    %v1673 = vunpack.c.h.b16 %v921
    %v1674 = vunpack.c.l.b16 %v922
    %v1675 = vunpack.c.h.b16 %v922
    %v1676 = vunpack.c.l.b16 %v923
    %v1677 = vunpack.c.h.b16 %v923
    %v1678 = vunpack.c.l.b16 %v924
    %v1679 = vunpack.c.h.b16 %v924
    %v1680 = vunpack.c.l.b16 %v925
    %v1681 = vunpack.c.h.b16 %v925
    %v1682 = vunpack.c.l.b16 %v926
    %v1683 = vunpack.c.h.b16 %v926
    %v1684 = vunpack.c.l.b16 %v927
    %v1685 = vunpack.c.h.b16 %v927
    %v1686 = vunpack.c.l.b16 %v928
    %v1687 = vunpack.c.h.b16 %v928
    %v1688 = vunpack.c.l.b16 %v929
    %v1689 = vunpack.c.h.b16 %v929
    %v1690 = vunpack.c.l.b16 %v930
    %v1691 = vunpack.c.h.b16 %v930
    %v1692 = vunpack.c.l.b16 %v931
    %v1693 = vunpack.c.h.b16 %v931
    %v1694 = vunpack.c.l.b16 %v932
    %v1695 = vunpack.c.h.b16 %v932
    %v1696 = vunpack.c.l.b16 %v933
    %v1697 = vunpack.c.h.b16 %v933
    %v1698 = vunpack.c.l.b16 %v934
    %v1699 = vunpack.c.h.b16 %v934
    %v1700 = vunpack.c.l.b16 %v935
    %v1701 = vunpack.c.h.b16 %v935
    %v1702 = vunpack.c.l.b16 %v936
    %v1703 = vunpack.c.h.b16 %v936
    %v1704 = vunpack.c.l.b16 %v937
    %v1705 = vunpack.c.h.b16 %v937
    %v1706 = vunpack.c.l.b16 %v938
    %v1707 = vunpack.c.h.b16 %v938
    %v1708 = vunpack.c.l.b16 %v939
    %v1709 = vunpack.c.h.b16 %v939
    %v1710 = vunpack.c.l.b16 %v940
    %v1711 = vunpack.c.h.b16 %v940
    %v1712 = vunpack.c.l.b16 %v941
    %v1713 = vunpack.c.h.b16 %v941
    %v1714 = vunpack.c.l.b16 %v942
    %v1715 = vunpack.c.h.b16 %v942
    %v1716 = vunpack.c.l.b16 %v943
    %v1717 = vunpack.c.h.b16 %v943
    %v1718 = vunpack.c.l.b16 %v944
    %v1719 = vunpack.c.h.b16 %v944
    %v1720 = vunpack.c.l.b16 %v945
    %v1721 = vunpack.c.h.b16 %v945
    %v1722 = vunpack.c.l.b16 %v946
    %v1723 = vunpack.c.h.b16 %v946
    %v1724 = vunpack.c.l.b16 %v947
    %v1725 = vunpack.c.h.b16 %v947
    %v1726 = vunpack.c.l.b16 %v948
    %v1727 = vunpack.c.h.b16 %v948
    %v1728 = vunpack.c.l.b16 %v949
    %v1729 = vunpack.c.h.b16 %v949
    %v1730 = vunpack.c.l.b16 %v950
    %v1731 = vunpack.c.h.b16 %v950
    %v1732 = vunpack.c.l.b16 %v951
    %v1733 = vunpack.c.h.b16 %v951
    %v1734 = vunpack.c.l.b16 %v952
    %v1735 = vunpack.c.h.b16 %v952
    %v1736 = vunpack.c.l.b16 %v953
    %v1737 = vunpack.c.h.b16 %v953
    %v1738 = vunpack.c.l.b16 %v954
    %v1739 = vunpack.c.h.b16 %v954
    %v1740 = vunpack.c.l.b16 %v955
    %v1741 = vunpack.c.h.b16 %v955
    %v1742 = vunpack.c.l.b16 %v956
    %v1743 = vunpack.c.h.b16 %v956
    %v1744 = vunpack.c.l.b16 %v957
    %v1745 = vunpack.c.h.b16 %v957
    %v1746 = vunpack.c.l.b16 %v958
    %v1747 = vunpack.c.h.b16 %v958
    %v1748 = vunpack.c.l.b16 %v959
    %v1749 = vunpack.c.h.b16 %v959
    %v1750 = vpack.c.b16 %v1242, %v1238
    %v1751 = vpack.c.b16 %v1243, %v1239
    %v1752 = vpack.c.b16 %v1244, %v1240
    %v1753 = vpack.c.b16 %v1245, %v1241
    %v1754 = vpack.c.b16 %v1250, %v1246
    %v1755 = vpack.c.b16 %v1251, %v1247
    %v1756 = vpack.c.b16 %v1252, %v1248
    %v1757 = vpack.c.b16 %v1253, %v1249
    %v1758 = vpack.c.b16 %v1258, %v1254
    %v1759 = vpack.c.b16 %v1259, %v1255
    %v1760 = vpack.c.b16 %v1260, %v1256
    %v1761 = vpack.c.b16 %v1261, %v1257
    %v1762 = vpack.c.b16 %v1266, %v1262
    %v1763 = vpack.c.b16 %v1267, %v1263
    %v1764 = vpack.c.b16 %v1268, %v1264
    %v1765 = vpack.c.b16 %v1269, %v1265
    %v1766 = vpack.c.b16 %v1274, %v1270
    %v1767 = vpack.c.b16 %v1275, %v1271
    %v1768 = vpack.c.b16 %v1276, %v1272
    %v1769 = vpack.c.b16 %v1277, %v1273
    %v1770 = vpack.c.b16 %v1282, %v1278
    %v1771 = vpack.c.b16 %v1283, %v1279
    %v1772 = vpack.c.b16 %v1284, %v1280
    %v1773 = vpack.c.b16 %v1285, %v1281
    %v1774 = vpack.c.b16 %v1290, %v1286
    %v1775 = vpack.c.b16 %v1291, %v1287
    %v1776 = vpack.c.b16 %v1292, %v1288
    %v1777 = vpack.c.b16 %v1293, %v1289
    %v1778 = vpack.c.b16 %v1298, %v1294
    %v1779 = vpack.c.b16 %v1299, %v1295
    %v1780 = vpack.c.b16 %v1300, %v1296
    %v1781 = vpack.c.b16 %v1301, %v1297
    %v1782 = vpack.c.b16 %v1306, %v1302
    %v1783 = vpack.c.b16 %v1307, %v1303
    %v1784 = vpack.c.b16 %v1308, %v1304
    %v1785 = vpack.c.b16 %v1309, %v1305
    %v1786 = vpack.c.b16 %v1314, %v1310
    %v1787 = vpack.c.b16 %v1315, %v1311
    %v1788 = vpack.c.b16 %v1316, %v1312
    %v1789 = vpack.c.b16 %v1317, %v1313
    %v1790 = vpack.c.b16 %v1322, %v1318
    %v1791 = vpack.c.b16 %v1323, %v1319
    %v1792 = vpack.c.b16 %v1324, %v1320
    %v1793 = vpack.c.b16 %v1325, %v1321
    %v1794 = vpack.c.b16 %v1330, %v1326
    %v1795 = vpack.c.b16 %v1331, %v1327
    %v1796 = vpack.c.b16 %v1332, %v1328
    %v1797 = vpack.c.b16 %v1333, %v1329
    %v1798 = vpack.c.b16 %v1338, %v1334
    %v1799 = vpack.c.b16 %v1339, %v1335
    %v1800 = vpack.c.b16 %v1340, %v1336
    %v1801 = vpack.c.b16 %v1341, %v1337
    %v1802 = vpack.c.b16 %v1346, %v1342
    %v1803 = vpack.c.b16 %v1347, %v1343
    %v1804 = vpack.c.b16 %v1348, %v1344
    %v1805 = vpack.c.b16 %v1349, %v1345
    %v1806 = vpack.c.b16 %v1354, %v1350
    %v1807 = vpack.c.b16 %v1355, %v1351
    %v1808 = vpack.c.b16 %v1356, %v1352
    %v1809 = vpack.c.b16 %v1357, %v1353
    %v1810 = vpack.c.b16 %v1362, %v1358
    %v1811 = vpack.c.b16 %v1363, %v1359
    %v1812 = vpack.c.b16 %v1364, %v1360
    %v1813 = vpack.c.b16 %v1365, %v1361
    %v1814 = vpack.c.b16 %v1370, %v1366
    %v1815 = vpack.c.b16 %v1371, %v1367
    %v1816 = vpack.c.b16 %v1372, %v1368
    %v1817 = vpack.c.b16 %v1373, %v1369
    %v1818 = vpack.c.b16 %v1378, %v1374
    %v1819 = vpack.c.b16 %v1379, %v1375
    %v1820 = vpack.c.b16 %v1380, %v1376
    %v1821 = vpack.c.b16 %v1381, %v1377
    %v1822 = vpack.c.b16 %v1386, %v1382
    %v1823 = vpack.c.b16 %v1387, %v1383
    %v1824 = vpack.c.b16 %v1388, %v1384
    %v1825 = vpack.c.b16 %v1389, %v1385
    %v1826 = vpack.c.b16 %v1394, %v1390
    %v1827 = vpack.c.b16 %v1395, %v1391
    %v1828 = vpack.c.b16 %v1396, %v1392
    %v1829 = vpack.c.b16 %v1397, %v1393
    %v1830 = vpack.c.b16 %v1402, %v1398
    %v1831 = vpack.c.b16 %v1403, %v1399
    %v1832 = vpack.c.b16 %v1404, %v1400
    %v1833 = vpack.c.b16 %v1405, %v1401
    %v1834 = vpack.c.b16 %v1410, %v1406
    %v1835 = vpack.c.b16 %v1411, %v1407
    %v1836 = vpack.c.b16 %v1412, %v1408
    %v1837 = vpack.c.b16 %v1413, %v1409
    %v1838 = vpack.c.b16 %v1418, %v1414
    %v1839 = vpack.c.b16 %v1419, %v1415
    %v1840 = vpack.c.b16 %v1420, %v1416
    %v1841 = vpack.c.b16 %v1421, %v1417
    %v1842 = vpack.c.b16 %v1426, %v1422
    %v1843 = vpack.c.b16 %v1427, %v1423
    %v1844 = vpack.c.b16 %v1428, %v1424
    %v1845 = vpack.c.b16 %v1429, %v1425
    %v1846 = vpack.c.b16 %v1434, %v1430
    %v1847 = vpack.c.b16 %v1435, %v1431
    %v1848 = vpack.c.b16 %v1436, %v1432
    %v1849 = vpack.c.b16 %v1437, %v1433
    %v1850 = vpack.c.b16 %v1442, %v1438
    %v1851 = vpack.c.b16 %v1443, %v1439
    %v1852 = vpack.c.b16 %v1444, %v1440
    %v1853 = vpack.c.b16 %v1445, %v1441
    %v1854 = vpack.c.b16 %v1450, %v1446
    %v1855 = vpack.c.b16 %v1451, %v1447
    %v1856 = vpack.c.b16 %v1452, %v1448
    %v1857 = vpack.c.b16 %v1453, %v1449
    %v1858 = vpack.c.b16 %v1458, %v1454
    %v1859 = vpack.c.b16 %v1459, %v1455
    %v1860 = vpack.c.b16 %v1460, %v1456
    %v1861 = vpack.c.b16 %v1461, %v1457
    %v1862 = vpack.c.b16 %v1466, %v1462
    %v1863 = vpack.c.b16 %v1467, %v1463
    %v1864 = vpack.c.b16 %v1468, %v1464
    %v1865 = vpack.c.b16 %v1469, %v1465
    %v1866 = vpack.c.b16 %v1474, %v1470
    %v1867 = vpack.c.b16 %v1475, %v1471
    %v1868 = vpack.c.b16 %v1476, %v1472
    %v1869 = vpack.c.b16 %v1477, %v1473
    %v1870 = vpack.c.b16 %v1482, %v1478
    %v1871 = vpack.c.b16 %v1483, %v1479
    %v1872 = vpack.c.b16 %v1484, %v1480
    %v1873 = vpack.c.b16 %v1485, %v1481
    %v1874 = vpack.c.b16 %v1490, %v1486
    %v1875 = vpack.c.b16 %v1491, %v1487
    %v1876 = vpack.c.b16 %v1492, %v1488
    %v1877 = vpack.c.b16 %v1493, %v1489
    %v1878 = vpack.c.b16 %v1498, %v1494
    %v1879 = vpack.c.b16 %v1499, %v1495
    %v1880 = vpack.c.b16 %v1500, %v1496
    %v1881 = vpack.c.b16 %v1501, %v1497
    %v1882 = vpack.c.b16 %v1506, %v1502
    %v1883 = vpack.c.b16 %v1507, %v1503
    %v1884 = vpack.c.b16 %v1508, %v1504
    %v1885 = vpack.c.b16 %v1509, %v1505
    %v1886 = vpack.c.b16 %v1514, %v1510
    %v1887 = vpack.c.b16 %v1515, %v1511
    %v1888 = vpack.c.b16 %v1516, %v1512
    %v1889 = vpack.c.b16 %v1517, %v1513
    %v1890 = vpack.c.b16 %v1522, %v1518
    %v1891 = vpack.c.b16 %v1523, %v1519
    %v1892 = vpack.c.b16 %v1524, %v1520
    %v1893 = vpack.c.b16 %v1525, %v1521
    %v1894 = vpack.c.b16 %v1530, %v1526
    %v1895 = vpack.c.b16 %v1531, %v1527
    %v1896 = vpack.c.b16 %v1532, %v1528
    %v1897 = vpack.c.b16 %v1533, %v1529
    %v1898 = vpack.c.b16 %v1538, %v1534
    %v1899 = vpack.c.b16 %v1539, %v1535
    %v1900 = vpack.c.b16 %v1540, %v1536
    %v1901 = vpack.c.b16 %v1541, %v1537
    %v1902 = vpack.c.b16 %v1546, %v1542
    %v1903 = vpack.c.b16 %v1547, %v1543
    %v1904 = vpack.c.b16 %v1548, %v1544
    %v1905 = vpack.c.b16 %v1549, %v1545
    %v1906 = vpack.c.b16 %v1554, %v1550
    %v1907 = vpack.c.b16 %v1555, %v1551
    %v1908 = vpack.c.b16 %v1556, %v1552
    %v1909 = vpack.c.b16 %v1557, %v1553
    %v1910 = vpack.c.b16 %v1562, %v1558
    %v1911 = vpack.c.b16 %v1563, %v1559
    %v1912 = vpack.c.b16 %v1564, %v1560
    %v1913 = vpack.c.b16 %v1565, %v1561
    %v1914 = vpack.c.b16 %v1570, %v1566
    %v1915 = vpack.c.b16 %v1571, %v1567
    %v1916 = vpack.c.b16 %v1572, %v1568
    %v1917 = vpack.c.b16 %v1573, %v1569
    %v1918 = vpack.c.b16 %v1578, %v1574
    %v1919 = vpack.c.b16 %v1579, %v1575
    %v1920 = vpack.c.b16 %v1580, %v1576
    %v1921 = vpack.c.b16 %v1581, %v1577
    %v1922 = vpack.c.b16 %v1586, %v1582
    %v1923 = vpack.c.b16 %v1587, %v1583
    %v1924 = vpack.c.b16 %v1588, %v1584
    %v1925 = vpack.c.b16 %v1589, %v1585
    %v1926 = vpack.c.b16 %v1594, %v1590
    %v1927 = vpack.c.b16 %v1595, %v1591
    %v1928 = vpack.c.b16 %v1596, %v1592
    %v1929 = vpack.c.b16 %v1597, %v1593
    %v1930 = vpack.c.b16 %v1602, %v1598
    %v1931 = vpack.c.b16 %v1603, %v1599
    %v1932 = vpack.c.b16 %v1604, %v1600
    %v1933 = vpack.c.b16 %v1605, %v1601
    %v1934 = vpack.c.b16 %v1610, %v1606
    %v1935 = vpack.c.b16 %v1611, %v1607
    %v1936 = vpack.c.b16 %v1612, %v1608
    %v1937 = vpack.c.b16 %v1613, %v1609
    %v1938 = vpack.c.b16 %v1618, %v1614
    %v1939 = vpack.c.b16 %v1619, %v1615
    %v1940 = vpack.c.b16 %v1620, %v1616
    %v1941 = vpack.c.b16 %v1621, %v1617
    %v1942 = vpack.c.b16 %v1626, %v1622
    %v1943 = vpack.c.b16 %v1627, %v1623
    %v1944 = vpack.c.b16 %v1628, %v1624
    %v1945 = vpack.c.b16 %v1629, %v1625
    %v1946 = vpack.c.b16 %v1634, %v1630
    %v1947 = vpack.c.b16 %v1635, %v1631
    %v1948 = vpack.c.b16 %v1636, %v1632
    %v1949 = vpack.c.b16 %v1637, %v1633
    %v1950 = vpack.c.b16 %v1642, %v1638
    %v1951 = vpack.c.b16 %v1643, %v1639
    %v1952 = vpack.c.b16 %v1644, %v1640
    %v1953 = vpack.c.b16 %v1645, %v1641
    %v1954 = vpack.c.b16 %v1650, %v1646
    %v1955 = vpack.c.b16 %v1651, %v1647
    %v1956 = vpack.c.b16 %v1652, %v1648
    %v1957 = vpack.c.b16 %v1653, %v1649
    %v1958 = vpack.c.b16 %v1658, %v1654
    %v1959 = vpack.c.b16 %v1659, %v1655
    %v1960 = vpack.c.b16 %v1660, %v1656
    %v1961 = vpack.c.b16 %v1661, %v1657
    %v1962 = vpack.c.b16 %v1666, %v1662
    %v1963 = vpack.c.b16 %v1667, %v1663
    %v1964 = vpack.c.b16 %v1668, %v1664
    %v1965 = vpack.c.b16 %v1669, %v1665
    %v1966 = vpack.c.b16 %v1674, %v1670
    %v1967 = vpack.c.b16 %v1675, %v1671
    %v1968 = vpack.c.b16 %v1676, %v1672
    %v1969 = vpack.c.b16 %v1677, %v1673
    %v1970 = vpack.c.b16 %v1682, %v1678
    %v1971 = vpack.c.b16 %v1683, %v1679
    %v1972 = vpack.c.b16 %v1684, %v1680
    %v1973 = vpack.c.b16 %v1685, %v1681
    %v1974 = vpack.c.b16 %v1690, %v1686
    %v1975 = vpack.c.b16 %v1691, %v1687
    %v1976 = vpack.c.b16 %v1692, %v1688
    %v1977 = vpack.c.b16 %v1693, %v1689
    %v1978 = vpack.c.b16 %v1698, %v1694
    %v1979 = vpack.c.b16 %v1699, %v1695
    %v1980 = vpack.c.b16 %v1700, %v1696
    %v1981 = vpack.c.b16 %v1701, %v1697
    %v1982 = vpack.c.b16 %v1706, %v1702
    %v1983 = vpack.c.b16 %v1707, %v1703
    %v1984 = vpack.c.b16 %v1708, %v1704
    %v1985 = vpack.c.b16 %v1709, %v1705
    %v1986 = vpack.c.b16 %v1714, %v1710
    %v1987 = vpack.c.b16 %v1715, %v1711
    %v1988 = vpack.c.b16 %v1716, %v1712
    %v1989 = vpack.c.b16 %v1717, %v1713
    %v1990 = vpack.c.b16 %v1722, %v1718
    %v1991 = vpack.c.b16 %v1723, %v1719
    %v1992 = vpack.c.b16 %v1724, %v1720
    %v1993 = vpack.c.b16 %v1725, %v1721
    %v1994 = vpack.c.b16 %v1730, %v1726
    %v1995 = vpack.c.b16 %v1731, %v1727
    %v1996 = vpack.c.b16 %v1732, %v1728
    %v1997 = vpack.c.b16 %v1733, %v1729
    %v1998 = vpack.c.b16 %v1738, %v1734
    %v1999 = vpack.c.b16 %v1739, %v1735
    %v2000 = vpack.c.b16 %v1740, %v1736
    %v2001 = vpack.c.b16 %v1741, %v1737
    %v2002 = vpack.c.b16 %v1746, %v1742
    %v2003 = vpack.c.b16 %v1747, %v1743
    %v2004 = vpack.c.b16 %v1748, %v1744
    %v2005 = vpack.c.b16 %v1749, %v1745
    %2262 = vmatprep.subr.bf16.mxu0 %v1751
    %2263 = vmatpush1.bf16.msra.mxu0 %v1750
    %2264 = vmatprep.subr.bf16.mxu0 %v1755
    %2265 = vmatpush1.bf16.msra.mxu0 %v1754
    %2266 = vmatprep.subr.bf16.mxu0 %v1759
    %2267 = vmatpush1.bf16.msra.mxu0 %v1758
    %2268 = vmatprep.subr.bf16.mxu0 %v1763
    %2269 = vmatpush1.bf16.msra.mxu0 %v1762
    %2270 = vmatprep.subr.bf16.mxu0 %v1767
    %2271 = vmatpush1.bf16.msra.mxu0 %v1766
    %2272 = vmatprep.subr.bf16.mxu0 %v1771
    %2273 = vmatpush1.bf16.msra.mxu0 %v1770
    %2274 = vmatprep.subr.bf16.mxu0 %v1775
    %2275 = vmatpush1.bf16.msra.mxu0 %v1774
    %2276 = vmatprep.subr.bf16.mxu0 %v1779
    %2277 = vmatpush1.bf16.msra.mxu0 %v1778
    %2278 = vmatprep.subr.bf16.mxu0 %v1783
    %2279 = vmatpush1.bf16.msra.mxu0 %v1782
    %2280 = vmatprep.subr.bf16.mxu0 %v1787
    %2281 = vmatpush1.bf16.msra.mxu0 %v1786
    %2282 = vmatprep.subr.bf16.mxu0 %v1791
    %2283 = vmatpush1.bf16.msra.mxu0 %v1790
    %2284 = vmatprep.subr.bf16.mxu0 %v1795
    %2285 = vmatpush1.bf16.msra.mxu0 %v1794
    %2286 = vmatprep.subr.bf16.mxu0 %v1799
    %2287 = vmatpush1.bf16.msra.mxu0 %v1798
    %2288 = vmatprep.subr.bf16.mxu0 %v1803
    %2289 = vmatpush1.bf16.msra.mxu0 %v1802
    %2290 = vmatprep.subr.bf16.mxu0 %v1807
    %2291 = vmatpush1.bf16.msra.mxu0 %v1806
    %2292 = vmatprep.subr.bf16.mxu0 %v1811
    %2293 = vmatpush1.bf16.msra.mxu0 %v1810
    %2294 = vmatprep.mubr.bf16.mxu0 %v697
    %2295 = vmatmul.mubr.bf16.gmra.mrb[0].mxu0 %v696
    %v2296 = vpop.f32.mrb[0].mxu0
    %v2297 = vadd.f32 %v965, %v2296
    %v2298 = vpop.f32.mrb[0].mxu0
    %v2299 = vadd.f32 %v969, %v2298
    %v2300 = vpop.f32.mrb[0].mxu0
    %v2301 = vpop.f32.mrb[0].mxu0
    %2302 = vdwg.mxu0
    %2303 = vmatprep.subr.bf16.mxu0 %v1815
    %2304 = vmatpush1.bf16.msra.mxu0 %v1814
    %2305 = vmatprep.subr.bf16.mxu0 %v1819
    %2306 = vmatpush1.bf16.msra.mxu0 %v1818
    %2307 = vmatprep.subr.bf16.mxu0 %v1823
    %2308 = vmatpush1.bf16.msra.mxu0 %v1822
    %2309 = vmatprep.subr.bf16.mxu0 %v1827
    %2310 = vmatpush1.bf16.msra.mxu0 %v1826
    %2311 = vmatprep.subr.bf16.mxu0 %v1831
    %2312 = vmatpush1.bf16.msra.mxu0 %v1830
    %2313 = vmatprep.subr.bf16.mxu0 %v1835
    %2314 = vmatpush1.bf16.msra.mxu0 %v1834
    %2315 = vmatprep.subr.bf16.mxu0 %v1839
    %2316 = vmatpush1.bf16.msra.mxu0 %v1838
    %2317 = vmatprep.subr.bf16.mxu0 %v1843
    %2318 = vmatpush1.bf16.msra.mxu0 %v1842
    %2319 = vmatprep.subr.bf16.mxu0 %v1847
    %2320 = vmatpush1.bf16.msra.mxu0 %v1846
    %2321 = vmatprep.subr.bf16.mxu0 %v1851
    %2322 = vmatpush1.bf16.msra.mxu0 %v1850
    %2323 = vmatprep.subr.bf16.mxu0 %v1855
    %2324 = vmatpush1.bf16.msra.mxu0 %v1854
    %2325 = vmatprep.subr.bf16.mxu0 %v1859
    %2326 = vmatpush1.bf16.msra.mxu0 %v1858
    %2327 = vmatprep.subr.bf16.mxu0 %v1863
    %2328 = vmatpush1.bf16.msra.mxu0 %v1862
    %2329 = vmatprep.subr.bf16.mxu0 %v1867
    %2330 = vmatpush1.bf16.msra.mxu0 %v1866
    %2331 = vmatprep.subr.bf16.mxu0 %v1871
    %2332 = vmatpush1.bf16.msra.mxu0 %v1870
    %2333 = vmatprep.subr.bf16.mxu0 %v1875
    %2334 = vmatpush1.bf16.msra.mxu0 %v1874
    %2335 = vmatprep.mubr.bf16.mxu0 %v699
    %2336 = vmatmul.mubr.bf16.gmra.mrb[0].mxu0 %v698
    %v2337 = vpop.f32.mrb[0].mxu0
    %v2338 = vadd.f32 %v2297, %v2337
    %v2339 = vpop.f32.mrb[0].mxu0
    %v2340 = vadd.f32 %v2299, %v2339
    %v2341 = vpop.f32.mrb[0].mxu0
    %v2342 = vpop.f32.mrb[0].mxu0
    %2343 = vdwg.mxu0
    %2344 = vmatprep.subr.bf16.mxu0 %v1879
    %2345 = vmatpush1.bf16.msra.mxu0 %v1878
    %2346 = vmatprep.subr.bf16.mxu0 %v1883
    %2347 = vmatpush1.bf16.msra.mxu0 %v1882
    %2348 = vmatprep.subr.bf16.mxu0 %v1887
    %2349 = vmatpush1.bf16.msra.mxu0 %v1886
    %2350 = vmatprep.subr.bf16.mxu0 %v1891
    %2351 = vmatpush1.bf16.msra.mxu0 %v1890
    %2352 = vmatprep.subr.bf16.mxu0 %v1895
    %2353 = vmatpush1.bf16.msra.mxu0 %v1894
    %2354 = vmatprep.subr.bf16.mxu0 %v1899
    %2355 = vmatpush1.bf16.msra.mxu0 %v1898
    %2356 = vmatprep.subr.bf16.mxu0 %v1903
    %2357 = vmatpush1.bf16.msra.mxu0 %v1902
    %2358 = vmatprep.subr.bf16.mxu0 %v1907
    %2359 = vmatpush1.bf16.msra.mxu0 %v1906
    %2360 = vmatprep.subr.bf16.mxu0 %v1911
    %2361 = vmatpush1.bf16.msra.mxu0 %v1910
    %2362 = vmatprep.subr.bf16.mxu0 %v1915
    %2363 = vmatpush1.bf16.msra.mxu0 %v1914
    %2364 = vmatprep.subr.bf16.mxu0 %v1919
    %2365 = vmatpush1.bf16.msra.mxu0 %v1918
    %2366 = vmatprep.subr.bf16.mxu0 %v1923
    %2367 = vmatpush1.bf16.msra.mxu0 %v1922
    %2368 = vmatprep.subr.bf16.mxu0 %v1927
    %2369 = vmatpush1.bf16.msra.mxu0 %v1926
    %2370 = vmatprep.subr.bf16.mxu0 %v1931
    %2371 = vmatpush1.bf16.msra.mxu0 %v1930
    %2372 = vmatprep.subr.bf16.mxu0 %v1935
    %2373 = vmatpush1.bf16.msra.mxu0 %v1934
    %2374 = vmatprep.subr.bf16.mxu0 %v1939
    %2375 = vmatpush1.bf16.msra.mxu0 %v1938
    %2376 = vmatprep.mubr.bf16.mxu0 %v701
    %2377 = vmatmul.mubr.bf16.gmra.mrb[0].mxu0 %v700
    %v2378 = vpop.f32.mrb[0].mxu0
    %v2379 = vadd.f32 %v2338, %v2378
    %v2380 = vpop.f32.mrb[0].mxu0
    %v2381 = vadd.f32 %v2340, %v2380
    %v2382 = vpop.f32.mrb[0].mxu0
    %v2383 = vpop.f32.mrb[0].mxu0
    %2384 = vdwg.mxu0
    %2385 = vmatprep.subr.bf16.mxu0 %v1943
    %2386 = vmatpush1.bf16.msra.mxu0 %v1942
    %2387 = vmatprep.subr.bf16.mxu0 %v1947
    %2388 = vmatpush1.bf16.msra.mxu0 %v1946
    %2389 = vmatprep.subr.bf16.mxu0 %v1951
    %2390 = vmatpush1.bf16.msra.mxu0 %v1950
    %2391 = vmatprep.subr.bf16.mxu0 %v1955
    %2392 = vmatpush1.bf16.msra.mxu0 %v1954
    %2393 = vmatprep.subr.bf16.mxu0 %v1959
    %2394 = vmatpush1.bf16.msra.mxu0 %v1958
    %2395 = vmatprep.subr.bf16.mxu0 %v1963
    %2396 = vmatpush1.bf16.msra.mxu0 %v1962
    %2397 = vmatprep.subr.bf16.mxu0 %v1967
    %2398 = vmatpush1.bf16.msra.mxu0 %v1966
    %2399 = vmatprep.subr.bf16.mxu0 %v1971
    %2400 = vmatpush1.bf16.msra.mxu0 %v1970
    %2401 = vmatprep.subr.bf16.mxu0 %v1975
    %2402 = vmatpush1.bf16.msra.mxu0 %v1974
    %2403 = vmatprep.subr.bf16.mxu0 %v1979
    %2404 = vmatpush1.bf16.msra.mxu0 %v1978
    %2405 = vmatprep.subr.bf16.mxu0 %v1983
    %2406 = vmatpush1.bf16.msra.mxu0 %v1982
    %2407 = vmatprep.subr.bf16.mxu0 %v1987
    %2408 = vmatpush1.bf16.msra.mxu0 %v1986
    %2409 = vmatprep.subr.bf16.mxu0 %v1991
    %2410 = vmatpush1.bf16.msra.mxu0 %v1990
    %2411 = vmatprep.subr.bf16.mxu0 %v1995
    %2412 = vmatpush1.bf16.msra.mxu0 %v1994
    %2413 = vmatprep.subr.bf16.mxu0 %v1999
    %2414 = vmatpush1.bf16.msra.mxu0 %v1998
    %2415 = vmatprep.subr.bf16.mxu0 %v2003
    %2416 = vmatpush1.bf16.msra.mxu0 %v2002
    %2417 = vmatprep.mubr.bf16.mxu0 %v703
    %2418 = vmatmul.mubr.bf16.gmra.mrb[0].mxu0 %v702
    %v2419 = vpop.f32.mrb[0].mxu0
    %v2420 = vadd.f32 %v2379, %v2419
    %v2421 = vpop.f32.mrb[0].mxu0
    %v2422 = vadd.f32 %v2381, %v2421
    %v2423 = vpop.f32.mrb[0].mxu0
    %v2424 = vpop.f32.mrb[0].mxu0
    %2425 = vdwg.mxu0
    %2426 = vmatprep.subr.bf16.mxu0 %v1753
    %2427 = vmatpush1.bf16.msra.mxu0 %v1752
    %2428 = vmatprep.subr.bf16.mxu0 %v1757
    %2429 = vmatpush1.bf16.msra.mxu0 %v1756
    %2430 = vmatprep.subr.bf16.mxu0 %v1761
    %2431 = vmatpush1.bf16.msra.mxu0 %v1760
    %2432 = vmatprep.subr.bf16.mxu0 %v1765
    %2433 = vmatpush1.bf16.msra.mxu0 %v1764
    %2434 = vmatprep.subr.bf16.mxu0 %v1769
    %2435 = vmatpush1.bf16.msra.mxu0 %v1768
    %2436 = vmatprep.subr.bf16.mxu0 %v1773
    %2437 = vmatpush1.bf16.msra.mxu0 %v1772
    %2438 = vmatprep.subr.bf16.mxu0 %v1777
    %2439 = vmatpush1.bf16.msra.mxu0 %v1776
    %2440 = vmatprep.subr.bf16.mxu0 %v1781
    %2441 = vmatpush1.bf16.msra.mxu0 %v1780
    %2442 = vmatprep.subr.bf16.mxu0 %v1785
    %2443 = vmatpush1.bf16.msra.mxu0 %v1784
    %2444 = vmatprep.subr.bf16.mxu0 %v1789
    %2445 = vmatpush1.bf16.msra.mxu0 %v1788
    %2446 = vmatprep.subr.bf16.mxu0 %v1793
    %2447 = vmatpush1.bf16.msra.mxu0 %v1792
    %2448 = vmatprep.subr.bf16.mxu0 %v1797
    %2449 = vmatpush1.bf16.msra.mxu0 %v1796
    %2450 = vmatprep.subr.bf16.mxu0 %v1801
    %2451 = vmatpush1.bf16.msra.mxu0 %v1800
    %2452 = vmatprep.subr.bf16.mxu0 %v1805
    %2453 = vmatpush1.bf16.msra.mxu0 %v1804
    %2454 = vmatprep.subr.bf16.mxu0 %v1809
    %2455 = vmatpush1.bf16.msra.mxu0 %v1808
    %2456 = vmatprep.subr.bf16.mxu0 %v1813
    %2457 = vmatpush1.bf16.msra.mxu0 %v1812
    %2458 = vmatprep.mubr.bf16.mxu0 %v697
    %2459 = vmatmul.mubr.bf16.gmra.mrb[0].mxu0 %v696
    %v2460 = vpop.f32.mrb[0].mxu0
    %v2461 = vadd.f32 %v973, %v2460
    %v2462 = vpop.f32.mrb[0].mxu0
    %v2463 = vadd.f32 %v977, %v2462
    %v2464 = vpop.f32.mrb[0].mxu0
    %v2465 = vpop.f32.mrb[0].mxu0
    %2466 = vdwg.mxu0
    %2467 = vmatprep.subr.bf16.mxu0 %v1817
    %2468 = vmatpush1.bf16.msra.mxu0 %v1816
    %2469 = vmatprep.subr.bf16.mxu0 %v1821
    %2470 = vmatpush1.bf16.msra.mxu0 %v1820
    %2471 = vmatprep.subr.bf16.mxu0 %v1825
    %2472 = vmatpush1.bf16.msra.mxu0 %v1824
    %2473 = vmatprep.subr.bf16.mxu0 %v1829
    %2474 = vmatpush1.bf16.msra.mxu0 %v1828
    %2475 = vmatprep.subr.bf16.mxu0 %v1833
    %2476 = vmatpush1.bf16.msra.mxu0 %v1832
    %2477 = vmatprep.subr.bf16.mxu0 %v1837
    %2478 = vmatpush1.bf16.msra.mxu0 %v1836
    %2479 = vmatprep.subr.bf16.mxu0 %v1841
    %2480 = vmatpush1.bf16.msra.mxu0 %v1840
    %2481 = vmatprep.subr.bf16.mxu0 %v1845
    %2482 = vmatpush1.bf16.msra.mxu0 %v1844
    %2483 = vmatprep.subr.bf16.mxu0 %v1849
    %2484 = vmatpush1.bf16.msra.mxu0 %v1848
    %2485 = vmatprep.subr.bf16.mxu0 %v1853
    %2486 = vmatpush1.bf16.msra.mxu0 %v1852
    %2487 = vmatprep.subr.bf16.mxu0 %v1857
    %2488 = vmatpush1.bf16.msra.mxu0 %v1856
    %2489 = vmatprep.subr.bf16.mxu0 %v1861
    %2490 = vmatpush1.bf16.msra.mxu0 %v1860
    %2491 = vmatprep.subr.bf16.mxu0 %v1865
    %2492 = vmatpush1.bf16.msra.mxu0 %v1864
    %2493 = vmatprep.subr.bf16.mxu0 %v1869
    %2494 = vmatpush1.bf16.msra.mxu0 %v1868
    %2495 = vmatprep.subr.bf16.mxu0 %v1873
    %2496 = vmatpush1.bf16.msra.mxu0 %v1872
    %2497 = vmatprep.subr.bf16.mxu0 %v1877
    %2498 = vmatpush1.bf16.msra.mxu0 %v1876
    %2499 = vmatprep.mubr.bf16.mxu0 %v699
    %2500 = vmatmul.mubr.bf16.gmra.mrb[0].mxu0 %v698
    %v2501 = vpop.f32.mrb[0].mxu0
    %v2502 = vadd.f32 %v2461, %v2501
    %v2503 = vpop.f32.mrb[0].mxu0
    %v2504 = vadd.f32 %v2463, %v2503
    %v2505 = vpop.f32.mrb[0].mxu0
    %v2506 = vpop.f32.mrb[0].mxu0
    %2507 = vdwg.mxu0
    %2508 = vmatprep.subr.bf16.mxu0 %v1881
    %2509 = vmatpush1.bf16.msra.mxu0 %v1880
    %2510 = vmatprep.subr.bf16.mxu0 %v1885
    %2511 = vmatpush1.bf16.msra.mxu0 %v1884
    %2512 = vmatprep.subr.bf16.mxu0 %v1889
    %2513 = vmatpush1.bf16.msra.mxu0 %v1888
    %2514 = vmatprep.subr.bf16.mxu0 %v1893
    %2515 = vmatpush1.bf16.msra.mxu0 %v1892
    %2516 = vmatprep.subr.bf16.mxu0 %v1897
    %2517 = vmatpush1.bf16.msra.mxu0 %v1896
    %2518 = vmatprep.subr.bf16.mxu0 %v1901
    %2519 = vmatpush1.bf16.msra.mxu0 %v1900
    %2520 = vmatprep.subr.bf16.mxu0 %v1905
    %2521 = vmatpush1.bf16.msra.mxu0 %v1904
    %2522 = vmatprep.subr.bf16.mxu0 %v1909
    %2523 = vmatpush1.bf16.msra.mxu0 %v1908
    %2524 = vmatprep.subr.bf16.mxu0 %v1913
    %2525 = vmatpush1.bf16.msra.mxu0 %v1912
    %2526 = vmatprep.subr.bf16.mxu0 %v1917
    %2527 = vmatpush1.bf16.msra.mxu0 %v1916
    %2528 = vmatprep.subr.bf16.mxu0 %v1921
    %2529 = vmatpush1.bf16.msra.mxu0 %v1920
    %2530 = vmatprep.subr.bf16.mxu0 %v1925
    %2531 = vmatpush1.bf16.msra.mxu0 %v1924
    %2532 = vmatprep.subr.bf16.mxu0 %v1929
    %2533 = vmatpush1.bf16.msra.mxu0 %v1928
    %2534 = vmatprep.subr.bf16.mxu0 %v1933
    %2535 = vmatpush1.bf16.msra.mxu0 %v1932
    %2536 = vmatprep.subr.bf16.mxu0 %v1937
    %2537 = vmatpush1.bf16.msra.mxu0 %v1936
    %2538 = vmatprep.subr.bf16.mxu0 %v1941
    %2539 = vmatpush1.bf16.msra.mxu0 %v1940
    %2540 = vmatprep.mubr.bf16.mxu0 %v701
    %2541 = vmatmul.mubr.bf16.gmra.mrb[0].mxu0 %v700
    %v2542 = vpop.f32.mrb[0].mxu0
    %v2543 = vadd.f32 %v2502, %v2542
    %v2544 = vpop.f32.mrb[0].mxu0
    %v2545 = vadd.f32 %v2504, %v2544
    %v2546 = vpop.f32.mrb[0].mxu0
    %v2547 = vpop.f32.mrb[0].mxu0
    %2548 = vdwg.mxu0
    %2549 = vmatprep.subr.bf16.mxu0 %v1945
    %2550 = vmatpush1.bf16.msra.mxu0 %v1944
    %2551 = vmatprep.subr.bf16.mxu0 %v1949
    %2552 = vmatpush1.bf16.msra.mxu0 %v1948
    %2553 = vmatprep.subr.bf16.mxu0 %v1953
    %2554 = vmatpush1.bf16.msra.mxu0 %v1952
    %2555 = vmatprep.subr.bf16.mxu0 %v1957
    %2556 = vmatpush1.bf16.msra.mxu0 %v1956
    %2557 = vmatprep.subr.bf16.mxu0 %v1961
    %2558 = vmatpush1.bf16.msra.mxu0 %v1960
    %2559 = vmatprep.subr.bf16.mxu0 %v1965
    %2560 = vmatpush1.bf16.msra.mxu0 %v1964
    %2561 = vmatprep.subr.bf16.mxu0 %v1969
    %2562 = vmatpush1.bf16.msra.mxu0 %v1968
    %2563 = vmatprep.subr.bf16.mxu0 %v1973
    %2564 = vmatpush1.bf16.msra.mxu0 %v1972
    %2565 = vmatprep.subr.bf16.mxu0 %v1977
    %2566 = vmatpush1.bf16.msra.mxu0 %v1976
    %2567 = vmatprep.subr.bf16.mxu0 %v1981
    %2568 = vmatpush1.bf16.msra.mxu0 %v1980
    %2569 = vmatprep.subr.bf16.mxu0 %v1985
    %2570 = vmatpush1.bf16.msra.mxu0 %v1984
    %2571 = vmatprep.subr.bf16.mxu0 %v1989
    %2572 = vmatpush1.bf16.msra.mxu0 %v1988
    %2573 = vmatprep.subr.bf16.mxu0 %v1993
    %2574 = vmatpush1.bf16.msra.mxu0 %v1992
    %2575 = vmatprep.subr.bf16.mxu0 %v1997
    %2576 = vmatpush1.bf16.msra.mxu0 %v1996
    %2577 = vmatprep.subr.bf16.mxu0 %v2001
    %2578 = vmatpush1.bf16.msra.mxu0 %v2000
    %2579 = vmatprep.subr.bf16.mxu0 %v2005
    %2580 = vmatpush1.bf16.msra.mxu0 %v2004
    %2581 = vmatprep.mubr.bf16.mxu0 %v703
    %2582 = vmatmul.mubr.bf16.gmra.mrb[0].mxu0 %v702
    %v2583 = vpop.f32.mrb[0].mxu0
    %v2584 = vadd.f32 %v2543, %v2583
    %v2585 = vpop.f32.mrb[0].mxu0
    %v2586 = vadd.f32 %v2545, %v2585
    %v2587 = vpop.f32.mrb[0].mxu0
    %v2588 = vpop.f32.mrb[0].mxu0
    %2589 = vdwg.mxu0
    %v2590 = vmax.f32 %v2420, 0.0
    %v2591 = vmax.f32 %v2422, 0.0
    %v2592 = vmax.f32 %v2584, 0.0
    %v2593 = vmax.f32 %v2586, 0.0
    %v2594 = vpack.c.bf16 %v2590, %v2590
    %v2595 = vpack.c.bf16 %v2591, %v2591
    %v2596 = vpack.c.bf16 %v2592, %v2592
    %v2597 = vpack.c.bf16 %v2593, %v2593
    %v2598 = vld [vmem:[#allocation11] sm:$0xf]
    %v2599 = vld [vmem:[#allocation11 + $0x4] sm:$0xf]
    %v2600 = vld [vmem:[#allocation11 + $0x8] sm:$0xf]
    %v2601 = vld [vmem:[#allocation11 + $0xc] sm:$0xf]
    %v2602 = vld [vmem:[#allocation11 + $0x10] sm:$0xf]
    %v2603 = vld [vmem:[#allocation11 + $0x14] sm:$0xf]
    %v2604 = vld [vmem:[#allocation11 + $0x18] sm:$0xf]
    %v2605 = vld [vmem:[#allocation11 + $0x1c] sm:$0xf]
    %v2606 = vld [vmem:[#allocation11 + $0x20] sm:$0xf]
    %v2607 = vld [vmem:[#allocation11 + $0x24] sm:$0xf]
    %v2608 = vld [vmem:[#allocation11 + $0x28] sm:$0xf]
    %v2609 = vld [vmem:[#allocation11 + $0x2c] sm:$0xf]
    %v2610 = vld [vmem:[#allocation11 + $0x30] sm:$0xf]
    %v2611 = vld [vmem:[#allocation11 + $0x34] sm:$0xf]
    %v2612 = vld [vmem:[#allocation11 + $0x38] sm:$0xf]
    %v2613 = vld [vmem:[#allocation11 + $0x3c] sm:$0xf]
    %v2614 = vld [vmem:[#allocation11 + $0x40] sm:$0xf]
    %v2615 = vld [vmem:[#allocation11 + $0x44] sm:$0xf]
    %v2616 = vld [vmem:[#allocation11 + $0x48] sm:$0xf]
    %v2617 = vld [vmem:[#allocation11 + $0x4c] sm:$0xf]
    %v2618 = vld [vmem:[#allocation11 + $0x50] sm:$0xf]
    %v2619 = vld [vmem:[#allocation11 + $0x54] sm:$0xf]
    %v2620 = vld [vmem:[#allocation11 + $0x58] sm:$0xf]
    %v2621 = vld [vmem:[#allocation11 + $0x5c] sm:$0xf]
    %v2622 = vld [vmem:[#allocation11 + $0x60] sm:$0xf]
    %v2623 = vld [vmem:[#allocation11 + $0x64] sm:$0xf]
    %v2624 = vld [vmem:[#allocation11 + $0x68] sm:$0xf]
    %v2625 = vld [vmem:[#allocation11 + $0x6c] sm:$0xf]
    %v2626 = vld [vmem:[#allocation11 + $0x70] sm:$0xf]
    %v2627 = vld [vmem:[#allocation11 + $0x74] sm:$0xf]
    %v2628 = vld [vmem:[#allocation11 + $0x78] sm:$0xf]
    %v2629 = vld [vmem:[#allocation11 + $0x7c] sm:$0xf]
    %v2630 = vld [vmem:[#allocation11 + $0x80] sm:$0xf]
    %v2631 = vld [vmem:[#allocation11 + $0x84] sm:$0xf]
    %v2632 = vld [vmem:[#allocation11 + $0x88] sm:$0xf]
    %v2633 = vld [vmem:[#allocation11 + $0x8c] sm:$0xf]
    %v2634 = vld [vmem:[#allocation11 + $0x90] sm:$0xf]
    %v2635 = vld [vmem:[#allocation11 + $0x94] sm:$0xf]
    %v2636 = vld [vmem:[#allocation11 + $0x98] sm:$0xf]
    %v2637 = vld [vmem:[#allocation11 + $0x9c] sm:$0xf]
    %v2638 = vld [vmem:[#allocation11 + $0xa0] sm:$0xf]
    %v2639 = vld [vmem:[#allocation11 + $0xa4] sm:$0xf]
    %v2640 = vld [vmem:[#allocation11 + $0xa8] sm:$0xf]
    %v2641 = vld [vmem:[#allocation11 + $0xac] sm:$0xf]
    %v2642 = vld [vmem:[#allocation11 + $0xb0] sm:$0xf]
    %v2643 = vld [vmem:[#allocation11 + $0xb4] sm:$0xf]
    %v2644 = vld [vmem:[#allocation11 + $0xb8] sm:$0xf]
    %v2645 = vld [vmem:[#allocation11 + $0xbc] sm:$0xf]
    %v2646 = vld [vmem:[#allocation11 + $0xc0] sm:$0xf]
    %v2647 = vld [vmem:[#allocation11 + $0xc4] sm:$0xf]
    %v2648 = vld [vmem:[#allocation11 + $0xc8] sm:$0xf]
    %v2649 = vld [vmem:[#allocation11 + $0xcc] sm:$0xf]
    %v2650 = vld [vmem:[#allocation11 + $0xd0] sm:$0xf]
    %v2651 = vld [vmem:[#allocation11 + $0xd4] sm:$0xf]
    %v2652 = vld [vmem:[#allocation11 + $0xd8] sm:$0xf]
    %v2653 = vld [vmem:[#allocation11 + $0xdc] sm:$0xf]
    %v2654 = vld [vmem:[#allocation11 + $0xe0] sm:$0xf]
    %v2655 = vld [vmem:[#allocation11 + $0xe4] sm:$0xf]
    %v2656 = vld [vmem:[#allocation11 + $0xe8] sm:$0xf]
    %v2657 = vld [vmem:[#allocation11 + $0xec] sm:$0xf]
    %v2658 = vld [vmem:[#allocation11 + $0xf0] sm:$0xf]
    %v2659 = vld [vmem:[#allocation11 + $0xf4] sm:$0xf]
    %v2660 = vld [vmem:[#allocation11 + $0xf8] sm:$0xf]
    %v2661 = vld [vmem:[#allocation11 + $0xfc] sm:$0xf]
    %v2662 = vld [vmem:[%s6] sm:$0x1]
    %v2664 = vlaneseq
    %v2665 = vshrl.u32 %v2664, 7
    %v2666 = vsub.s32 0, %v2665
    %v2667 = vrot.slane %v2662, %v2666
    %v2733 = vunpack.c.l.b16 %v2598
    %v2734 = vunpack.c.l.b16 %v2599
    %v2735 = vunpack.c.l.b16 %v2600
    %v2736 = vunpack.c.l.b16 %v2601
    %v2737 = vunpack.c.l.b16 %v2602
    %v2738 = vunpack.c.l.b16 %v2603
    %v2739 = vunpack.c.l.b16 %v2604
    %v2740 = vunpack.c.l.b16 %v2605
    %v2741 = vunpack.c.l.b16 %v2606
    %v2742 = vunpack.c.l.b16 %v2607
    %v2743 = vunpack.c.l.b16 %v2608
    %v2744 = vunpack.c.l.b16 %v2609
    %v2745 = vunpack.c.l.b16 %v2610
    %v2746 = vunpack.c.l.b16 %v2611
    %v2747 = vunpack.c.l.b16 %v2612
    %v2748 = vunpack.c.l.b16 %v2613
    %v2749 = vunpack.c.l.b16 %v2614
    %v2750 = vunpack.c.l.b16 %v2615
    %v2751 = vunpack.c.l.b16 %v2616
    %v2752 = vunpack.c.l.b16 %v2617
    %v2753 = vunpack.c.l.b16 %v2618
    %v2754 = vunpack.c.l.b16 %v2619
    %v2755 = vunpack.c.l.b16 %v2620
    %v2756 = vunpack.c.l.b16 %v2621
    %v2757 = vunpack.c.l.b16 %v2622
    %v2758 = vunpack.c.l.b16 %v2623
    %v2759 = vunpack.c.l.b16 %v2624
    %v2760 = vunpack.c.l.b16 %v2625
    %v2761 = vunpack.c.l.b16 %v2626
    %v2762 = vunpack.c.l.b16 %v2627
    %v2763 = vunpack.c.l.b16 %v2628
    %v2764 = vunpack.c.l.b16 %v2629
    %v2765 = vunpack.c.l.b16 %v2630
    %v2766 = vunpack.c.l.b16 %v2631
    %v2767 = vunpack.c.l.b16 %v2632
    %v2768 = vunpack.c.l.b16 %v2633
    %v2769 = vunpack.c.l.b16 %v2634
    %v2770 = vunpack.c.l.b16 %v2635
    %v2771 = vunpack.c.l.b16 %v2636
    %v2772 = vunpack.c.l.b16 %v2637
    %v2773 = vunpack.c.l.b16 %v2638
    %v2774 = vunpack.c.l.b16 %v2639
    %v2775 = vunpack.c.l.b16 %v2640
    %v2776 = vunpack.c.l.b16 %v2641
    %v2777 = vunpack.c.l.b16 %v2642
    %v2778 = vunpack.c.l.b16 %v2643
    %v2779 = vunpack.c.l.b16 %v2644
    %v2780 = vunpack.c.l.b16 %v2645
    %v2781 = vunpack.c.l.b16 %v2646
    %v2782 = vunpack.c.l.b16 %v2647
    %v2783 = vunpack.c.l.b16 %v2648
    %v2784 = vunpack.c.l.b16 %v2649
    %v2785 = vunpack.c.l.b16 %v2650
    %v2786 = vunpack.c.l.b16 %v2651
    %v2787 = vunpack.c.l.b16 %v2652
    %v2788 = vunpack.c.l.b16 %v2653
    %v2789 = vunpack.c.l.b16 %v2654
    %v2790 = vunpack.c.l.b16 %v2655
    %v2791 = vunpack.c.l.b16 %v2656
    %v2792 = vunpack.c.l.b16 %v2657
    %v2793 = vunpack.c.l.b16 %v2658
    %v2794 = vunpack.c.l.b16 %v2659
    %v2795 = vunpack.c.l.b16 %v2660
    %v2796 = vunpack.c.l.b16 %v2661
    %v2797 = vpack.c.b16 %v2734, %v2733
    %v2798 = vpack.c.b16 %v2736, %v2735
    %v2799 = vpack.c.b16 %v2738, %v2737
    %v2800 = vpack.c.b16 %v2740, %v2739
    %v2801 = vpack.c.b16 %v2742, %v2741
    %v2802 = vpack.c.b16 %v2744, %v2743
    %v2803 = vpack.c.b16 %v2746, %v2745
    %v2804 = vpack.c.b16 %v2748, %v2747
    %v2805 = vpack.c.b16 %v2750, %v2749
    %v2806 = vpack.c.b16 %v2752, %v2751
    %v2807 = vpack.c.b16 %v2754, %v2753
    %v2808 = vpack.c.b16 %v2756, %v2755
    %v2809 = vpack.c.b16 %v2758, %v2757
    %v2810 = vpack.c.b16 %v2760, %v2759
    %v2811 = vpack.c.b16 %v2762, %v2761
    %v2812 = vpack.c.b16 %v2764, %v2763
    %v2813 = vpack.c.b16 %v2766, %v2765
    %v2814 = vpack.c.b16 %v2768, %v2767
    %v2815 = vpack.c.b16 %v2770, %v2769
    %v2816 = vpack.c.b16 %v2772, %v2771
    %v2817 = vpack.c.b16 %v2774, %v2773
    %v2818 = vpack.c.b16 %v2776, %v2775
    %v2819 = vpack.c.b16 %v2778, %v2777
    %v2820 = vpack.c.b16 %v2780, %v2779
    %v2821 = vpack.c.b16 %v2782, %v2781
    %v2822 = vpack.c.b16 %v2784, %v2783
    %v2823 = vpack.c.b16 %v2786, %v2785
    %v2824 = vpack.c.b16 %v2788, %v2787
    %v2825 = vpack.c.b16 %v2790, %v2789
    %v2826 = vpack.c.b16 %v2792, %v2791
    %v2827 = vpack.c.b16 %v2794, %v2793
    %v2828 = vpack.c.b16 %v2796, %v2795
    %2861 = vmatprep.subr.bf16.mxu0 0
    %2862 = vmatpush1.bf16.msra.mxu0 %v2797
    %2863 = vmatprep.subr.bf16.mxu0 0
    %2864 = vmatpush1.bf16.msra.mxu0 %v2798
    %2865 = vmatprep.subr.bf16.mxu0 0
    %2866 = vmatpush1.bf16.msra.mxu0 %v2799
    %2867 = vmatprep.subr.bf16.mxu0 0
    %2868 = vmatpush1.bf16.msra.mxu0 %v2800
    %2869 = vmatprep.subr.bf16.mxu0 0
    %2870 = vmatpush1.bf16.msra.mxu0 %v2801
    %2871 = vmatprep.subr.bf16.mxu0 0
    %2872 = vmatpush1.bf16.msra.mxu0 %v2802
    %2873 = vmatprep.subr.bf16.mxu0 0
    %2874 = vmatpush1.bf16.msra.mxu0 %v2803
    %2875 = vmatprep.subr.bf16.mxu0 0
    %2876 = vmatpush1.bf16.msra.mxu0 %v2804
    %2877 = vmatprep.subr.bf16.mxu0 0
    %2878 = vmatpush1.bf16.msra.mxu0 %v2805
    %2879 = vmatprep.subr.bf16.mxu0 0
    %2880 = vmatpush1.bf16.msra.mxu0 %v2806
    %2881 = vmatprep.subr.bf16.mxu0 0
    %2882 = vmatpush1.bf16.msra.mxu0 %v2807
    %2883 = vmatprep.subr.bf16.mxu0 0
    %2884 = vmatpush1.bf16.msra.mxu0 %v2808
    %2885 = vmatprep.subr.bf16.mxu0 0
    %2886 = vmatpush1.bf16.msra.mxu0 %v2809
    %2887 = vmatprep.subr.bf16.mxu0 0
    %2888 = vmatpush1.bf16.msra.mxu0 %v2810
    %2889 = vmatprep.subr.bf16.mxu0 0
    %2890 = vmatpush1.bf16.msra.mxu0 %v2811
    %2891 = vmatprep.subr.bf16.mxu0 0
    %2892 = vmatpush1.bf16.msra.mxu0 %v2812
    %2893 = vmatprep.mubr.bf16.mxu0 %v2595
    %2894 = vmatmul.mubr.bf16.gmra.mrb[0].mxu0 %v2594
    %v2895 = vpop.f32.mrb[0].mxu0
    %v2896 = vadd.f32 %v2667, %v2895
    %v2897 = vpop.f32.mrb[0].mxu0
    %v2898 = vpop.f32.mrb[0].mxu0
    %v2899 = vpop.f32.mrb[0].mxu0
    %2900 = vdwg.mxu0
    %2901 = vmatprep.subr.bf16.mxu0 0
    %2902 = vmatpush1.bf16.msra.mxu0 %v2813
    %2903 = vmatprep.subr.bf16.mxu0 0
    %2904 = vmatpush1.bf16.msra.mxu0 %v2814
    %2905 = vmatprep.subr.bf16.mxu0 0
    %2906 = vmatpush1.bf16.msra.mxu0 %v2815
    %2907 = vmatprep.subr.bf16.mxu0 0
    %2908 = vmatpush1.bf16.msra.mxu0 %v2816
    %2909 = vmatprep.subr.bf16.mxu0 0
    %2910 = vmatpush1.bf16.msra.mxu0 %v2817
    %2911 = vmatprep.subr.bf16.mxu0 0
    %2912 = vmatpush1.bf16.msra.mxu0 %v2818
    %2913 = vmatprep.subr.bf16.mxu0 0
    %2914 = vmatpush1.bf16.msra.mxu0 %v2819
    %2915 = vmatprep.subr.bf16.mxu0 0
    %2916 = vmatpush1.bf16.msra.mxu0 %v2820
    %2917 = vmatprep.subr.bf16.mxu0 0
    %2918 = vmatpush1.bf16.msra.mxu0 %v2821
    %2919 = vmatprep.subr.bf16.mxu0 0
    %2920 = vmatpush1.bf16.msra.mxu0 %v2822
    %2921 = vmatprep.subr.bf16.mxu0 0
    %2922 = vmatpush1.bf16.msra.mxu0 %v2823
    %2923 = vmatprep.subr.bf16.mxu0 0
    %2924 = vmatpush1.bf16.msra.mxu0 %v2824
    %2925 = vmatprep.subr.bf16.mxu0 0
    %2926 = vmatpush1.bf16.msra.mxu0 %v2825
    %2927 = vmatprep.subr.bf16.mxu0 0
    %2928 = vmatpush1.bf16.msra.mxu0 %v2826
    %2929 = vmatprep.subr.bf16.mxu0 0
    %2930 = vmatpush1.bf16.msra.mxu0 %v2827
    %2931 = vmatprep.subr.bf16.mxu0 0
    %2932 = vmatpush1.bf16.msra.mxu0 %v2828
    %2933 = vmatprep.mubr.bf16.mxu0 %v2597
    %2934 = vmatmul.mubr.bf16.gmra.mrb[0].mxu0 %v2596
    %v2935 = vpop.f32.mrb[0].mxu0
    %v2936 = vadd.f32 %v2896, %v2935
    %v2937 = vpop.f32.mrb[0].mxu0
    %v2938 = vpop.f32.mrb[0].mxu0
    %v2939 = vpop.f32.mrb[0].mxu0
    %2940 = vdwg.mxu0
    %v2941 = vmax.f32 %v2936, 0.0
    %v2942 = vpack.c.bf16 %v2941, %v2941
    %2943 = vst [vmem:[#allocation12] sm:$0xf] %v2942
    // Predicated region
    $region50: #{tpu_custom_call.1} parent=1 // pred_check
      _
    $region51: #{tpu_custom_call.1} parent=1 // pred_check_branch
      %2945 = sbr.rel (0) target = $region53
    $region52: #{tpu_custom_call.1} parent=1 // pred_region
      %s2947 = ssub.s32 64, 64
      %2948 = vsyncadd [#allocation5], %s2947
      %s2950 = sshll.u32 [#allocation12], 4
      %s2951 = int_to_ptr.vmem [resolvable:$true] %s2950
      %2953 = dma.vmem_to_hbm [thread:$0]  %s2951, 64, %s7, [#allocation5]
    $region53: #{tpu_custom_call.1} parent=1 // pred_fallthru
      _
    // Predicated region
    $region54: #{tpu_custom_call.1} parent=1 // pred_check
      _
    $region55: #{tpu_custom_call.1} parent=1 // pred_check_branch
      %2955 = sbr.rel (0) target = $region57
    $region56: #{tpu_custom_call.1} parent=1 // pred_region
      %2956 = dma.done [#allocation5], 64
    $region57: #{tpu_custom_call.1} parent=1 // pred_fallthru
      _
    %2957 = vsyncpa [#allocation4], 1
    %2958 = vsyncpa [#allocation7], 1
    %2959 = vsyncpa [#allocation10], 1
    %2960 = vsyncpa [#allocation5], 1

</llo_original>
